<compile_context>
chip_gen: v7x
topology: tpu7x:2x2x1
jax: 0.10.0
libtpu: 0.0.40
codegen_flags: <defaults>
</compile_context>

<pallas_src>
import jax
import jax.numpy as jnp
from jax.experimental import pallas as pl
from jax.experimental.pallas import tpu as pltpu

SEQ, BATCH, FEAT, HID = 8, 2, 4, 32  # small, consistent with an RAE
G = 4 * HID                          # 128 gate lanes (i, f, g, o)

# ---- row offsets inside the packed (PROWS, G) parameter blob ---------------
R_EW_IH = 0                 # (FEAT, G)  encoder W_ih^T
R_EW_HH = R_EW_IH + FEAT    # (HID,  G)  encoder W_hh^T
R_EB    = R_EW_HH + HID     # (1,    G)  encoder bias (b_ih + b_hh)
R_DW_IH = R_EB + 1          # (HID,  G)  decoder W_ih^T
R_DW_HH = R_DW_IH + HID     # (HID,  G)  decoder W_hh^T
R_DB    = R_DW_HH + HID     # (1,    G)  decoder bias
R_OW    = R_DB + 1          # (HID,  G)  output head weight, lanes [0:FEAT]
R_OB    = R_OW + HID        # (1,    G)  output head bias,   lanes [0:FEAT]
_RAW_ROWS = R_OB + 1
PROWS = ((_RAW_ROWS + 7) // 8) * 8  # pad rows to a multiple of 8 sublanes


def rae_kernel(x_ref, p_ref, out_ref):
    # x_ref:   (SEQ*BATCH, FEAT)   flattened time-major input
    # p_ref:   (PROWS, G)          packed parameters
    # out_ref: (SEQ*BATCH, FEAT)   flattened reconstruction

    x_all = x_ref[...]                                   # (SEQ*BATCH, FEAT)

    # Static slices of the packed parameter blob (free views).
    ew_ih = p_ref[R_EW_IH:R_EW_IH + FEAT, :]             # (FEAT, G)
    ew_hh = p_ref[R_EW_HH:R_EW_HH + HID, :]              # (HID, G)
    eb    = p_ref[R_EB:R_EB + 1, :]                      # (1, G)
    dw_ih = p_ref[R_DW_IH:R_DW_IH + HID, :]              # (HID, G)
    dw_hh = p_ref[R_DW_HH:R_DW_HH + HID, :]              # (HID, G)
    db    = p_ref[R_DB:R_DB + 1, :]                      # (1, G)
    ow    = p_ref[R_OW:R_OW + HID, :]                    # (HID, G) lanes 0:FEAT used
    ob    = p_ref[R_OB:R_OB + 1, :]                      # (1, G)   lanes 0:FEAT used

    # Lane mask selecting the g gate (lanes [2H, 3H)) -> tanh, rest sigmoid.
    lane = jax.lax.broadcasted_iota(jnp.int32, (BATCH, G), 1)
    g_mask = (lane >= 2 * HID) & (lane < 3 * HID)

    def cell(in_gates, h, c, w_hh):
        # in_gates already contains the input projection + bias.
        gates = in_gates + jnp.dot(h, w_hh, preferred_element_type=jnp.float32)
        sig = jax.nn.sigmoid(gates)          # one EUP push on the full 128 lanes
        th = jnp.tanh(gates)                 # one EUP push on the full 128 lanes
        act = jnp.where(g_mask, th, sig)
        i = act[:, 0 * HID:1 * HID]
        f = act[:, 1 * HID:2 * HID]
        g = act[:, 2 * HID:3 * HID]
        o = act[:, 3 * HID:4 * HID]
        c_new = f * c + i * g
        h_new = o * jnp.tanh(c_new)
        return h_new, c_new

    # ---- Encoder: input projection for all timesteps in one matmul --------
    x_gates = jnp.dot(x_all, ew_ih, preferred_element_type=jnp.float32) + eb  # (SEQ*BATCH, G)

    h = jnp.zeros((BATCH, HID), jnp.float32)
    c = jnp.zeros((BATCH, HID), jnp.float32)
    for t in range(SEQ):                                  # static unrolled, SEQ small
        h, c = cell(x_gates[t * BATCH:(t + 1) * BATCH, :], h, c, ew_hh)

    z = h                                                 # latent code (BATCH, HID)

    # ---- Decoder: constant input projection hoisted out of the loop -------
    z_gates = jnp.dot(z, dw_ih, preferred_element_type=jnp.float32) + db      # (BATCH, G)

    hd = jnp.zeros((BATCH, HID), jnp.float32)
    cd = jnp.zeros((BATCH, HID), jnp.float32)
    hs = []
    for t in range(SEQ):
        hd, cd = cell(z_gates, hd, cd, dw_hh)
        hs.append(hd)

    # ---- Batched output head: one matmul + bias, one store ----------------
    hd_all = jnp.concatenate(hs, axis=0)                  # (SEQ*BATCH, HID)
    y = jnp.dot(hd_all, ow, preferred_element_type=jnp.float32) + ob          # (SEQ*BATCH, G)
    out_ref[...] = y[:, :FEAT]                            # single (16, 4) store


def pack_params(params):
    """Pack the 8 parameter arrays into one (PROWS, G) f32 blob."""
    ew_ih, ew_hh, eb, dw_ih, dw_hh, db, ow, ob = params
    ow_p = jnp.zeros((HID, G), jnp.float32).at[:, :FEAT].set(ow)
    ob_p = jnp.zeros((1, G), jnp.float32).at[:, :FEAT].set(ob)
    blob = jnp.concatenate([ew_ih, ew_hh, eb, dw_ih, dw_hh, db, ow_p, ob_p], axis=0)
    pad = PROWS - blob.shape[0]
    if pad:
        blob = jnp.concatenate([blob, jnp.zeros((pad, G), jnp.float32)], axis=0)
    return blob


def rae_forward(x, packed_params):
    vmem = pl.BlockSpec(memory_space=pltpu.MemorySpace.VMEM)
    x_flat = x.reshape(SEQ * BATCH, FEAT)                 # free row-major reshape
    out_flat = pl.pallas_call(
        rae_kernel,
        out_shape=jax.ShapeDtypeStruct((SEQ * BATCH, FEAT), jnp.float32),
        in_specs=[vmem, vmem],
        out_specs=vmem,
    )(x_flat, packed_params)
    return out_flat.reshape(SEQ, BATCH, FEAT)


# --------------------------- pure-JAX reference ----------------------------
def _lstm_cell_ref(x_t, h, c, w_ih_t, w_hh_t, b):
    gates = jnp.dot(x_t, w_ih_t) + jnp.dot(h, w_hh_t) + b
    i = jax.nn.sigmoid(gates[:, 0 * HID:1 * HID])
    f = jax.nn.sigmoid(gates[:, 1 * HID:2 * HID])
    g = jnp.tanh(gates[:, 2 * HID:3 * HID])
    o = jax.nn.sigmoid(gates[:, 3 * HID:4 * HID])
    c_new = f * c + i * g
    h_new = o * jnp.tanh(c_new)
    return h_new, c_new


def rae_reference(x, params):
    ew_ih, ew_hh, eb, dw_ih, dw_hh, db, ow, ob = params
    h = jnp.zeros((BATCH, HID), jnp.float32)
    c = jnp.zeros((BATCH, HID), jnp.float32)
    for t in range(SEQ):
        h, c = _lstm_cell_ref(x[t], h, c, ew_ih, ew_hh, eb)
    z = h
    hd = jnp.zeros((BATCH, HID), jnp.float32)
    cd = jnp.zeros((BATCH, HID), jnp.float32)
    outs = []
    for t in range(SEQ):
        hd, cd = _lstm_cell_ref(z, hd, cd, dw_ih, dw_hh, db)
        outs.append(jnp.dot(hd, ow) + ob)
    return jnp.stack(outs, axis=0)


def init_params(key):
    """Deterministic PyTorch-style init: U(-1/sqrt(HID), 1/sqrt(HID))."""
    k = 1.0 / jnp.sqrt(jnp.float32(HID))
    keys = jax.random.split(key, 8)

    def u(kk, shape):
        return jax.random.uniform(kk, shape, jnp.float32, -k, k)

    ew_ih = u(keys[0], (FEAT, G))     # encoder W_ih^T
    ew_hh = u(keys[1], (HID, G))      # encoder W_hh^T
    eb = u(keys[2], (1, G))           # b_ih + b_hh folded together
    dw_ih = u(keys[3], (HID, G))      # decoder W_ih^T (input = latent, size HID)
    dw_hh = u(keys[4], (HID, G))      # decoder W_hh^T
    db = u(keys[5], (1, G))
    ow = u(keys[6], (HID, FEAT))      # output head HID -> FEAT
    ob = u(keys[7], (1, FEAT))
    return (ew_ih, ew_hh, eb, dw_ih, dw_hh, db, ow, ob)


if __name__ == "__main__":
    root = jax.random.PRNGKey(0)
    kx, kp = jax.random.split(root)

    # layout: (SEQ, BATCH, FEAT) time-major input sequence
    x = jax.random.normal(kx, (SEQ, BATCH, FEAT), jnp.float32)
    params = init_params(kp)
    packed = pack_params(params)          # pack once; 2 DMAs per call (x + blob)

    out = rae_forward(x, packed)
    out = jax.block_until_ready(out)

    ref = rae_reference(x, params)
    assert out.shape == (SEQ, BATCH, FEAT)
    assert jnp.allclose(out, ref, atol=1e-4, rtol=1e-4), "mismatch vs reference"

    print("KERNEL_OK")
</pallas_src>

<mosaic_0001>
module attributes {stable_mosaic.version = 11 : i64} {
  func.func @rae_kernel(%arg0: memref<16x4xf32, #tpu.memory_space<vmem>>, %arg1: memref<136x128xf32, #tpu.memory_space<vmem>>, %arg2: memref<16x4xf32, #tpu.memory_space<vmem>>) attributes {dimension_semantics = [], scalar_prefetch = 0 : i64, scratch_operands = 0 : i64, tpu.core_type = #tpu.core_type<tc>} {
    %c0 = arith.constant 0 : index
    %c0_0 = arith.constant 0 : index
    %0 = vector.load %arg0[%c0, %c0_0] : memref<16x4xf32, #tpu.memory_space<vmem>>, vector<16x4xf32>
    %c0_1 = arith.constant 0 : index
    %c0_2 = arith.constant 0 : index
    %1 = vector.load %arg1[%c0_1, %c0_2] : memref<136x128xf32, #tpu.memory_space<vmem>>, vector<4x128xf32>
    %c4 = arith.constant 4 : index
    %c0_3 = arith.constant 0 : index
    %2 = vector.load %arg1[%c4, %c0_3] : memref<136x128xf32, #tpu.memory_space<vmem>>, vector<32x128xf32>
    %c36 = arith.constant 36 : index
    %c0_4 = arith.constant 0 : index
    %3 = vector.load %arg1[%c36, %c0_4] : memref<136x128xf32, #tpu.memory_space<vmem>>, vector<1x128xf32>
    %c37 = arith.constant 37 : index
    %c0_5 = arith.constant 0 : index
    %4 = vector.load %arg1[%c37, %c0_5] : memref<136x128xf32, #tpu.memory_space<vmem>>, vector<32x128xf32>
    %c69 = arith.constant 69 : index
    %c0_6 = arith.constant 0 : index
    %5 = vector.load %arg1[%c69, %c0_6] : memref<136x128xf32, #tpu.memory_space<vmem>>, vector<32x128xf32>
    %c101 = arith.constant 101 : index
    %c0_7 = arith.constant 0 : index
    %6 = vector.load %arg1[%c101, %c0_7] : memref<136x128xf32, #tpu.memory_space<vmem>>, vector<1x128xf32>
    %c102 = arith.constant 102 : index
    %c0_8 = arith.constant 0 : index
    %7 = vector.load %arg1[%c102, %c0_8] : memref<136x128xf32, #tpu.memory_space<vmem>>, vector<32x128xf32>
    %c134 = arith.constant 134 : index
    %c0_9 = arith.constant 0 : index
    %8 = vector.load %arg1[%c134, %c0_9] : memref<136x128xf32, #tpu.memory_space<vmem>>, vector<1x128xf32>
    %9 = tpu.iota {dimensions = array<i32: 1>} : vector<2x128xi32>
    %c64_i32 = arith.constant 64 : i32
    %10 = vector.broadcast %c64_i32 : i32 to vector<2x128xi32>
    %11 = arith.cmpi sge, %9, %10 : vector<2x128xi32>
    %c96_i32 = arith.constant 96 : i32
    %12 = vector.broadcast %c96_i32 : i32 to vector<2x128xi32>
    %13 = arith.cmpi slt, %9, %12 : vector<2x128xi32>
    %14 = arith.andi %11, %13 : vector<2x128xi1>
    %cst = arith.constant dense<0.000000e+00> : vector<16x128xf32>
    %15 = tpu.matmul %0, %1, %cst {dimension_numbers = #tpu.dot_dimension_numbers<[1], [0], [0], [1], [0, 0, 1, 1], [], []>} : vector<16x4xf32>, vector<4x128xf32>, vector<16x128xf32> -> vector<16x128xf32>
    %16 = vector.broadcast %3 : vector<1x128xf32> to vector<16x128xf32>
    %17 = arith.addf %15, %16 : vector<16x128xf32>
    %cst_10 = arith.constant 0.000000e+00 : f32
    %18 = vector.broadcast %cst_10 : f32 to vector<2x32xf32>
    %cst_11 = arith.constant 0.000000e+00 : f32
    %19 = vector.broadcast %cst_11 : f32 to vector<2x32xf32>
    %20 = vector.extract_strided_slice %17 {offsets = [0, 0], sizes = [2, 128], strides = [1, 1]} : vector<16x128xf32> to vector<2x128xf32>
    %cst_12 = arith.constant dense<0.000000e+00> : vector<2x128xf32>
    %21 = tpu.matmul %18, %2, %cst_12 {dimension_numbers = #tpu.dot_dimension_numbers<[1], [0], [0], [1], [0, 0, 1, 1], [], []>} : vector<2x32xf32>, vector<32x128xf32>, vector<2x128xf32> -> vector<2x128xf32>
    %22 = arith.addf %20, %21 : vector<2x128xf32>
    %23 = arith.negf %22 : vector<2x128xf32>
    %24 = math.exp %23 : vector<2x128xf32>
    %cst_13 = arith.constant 1.000000e+00 : f32
    %25 = vector.broadcast %cst_13 : f32 to vector<2x128xf32>
    %26 = arith.addf %25, %24 : vector<2x128xf32>
    %27 = arith.divf %25, %26 : vector<2x128xf32>
    %28 = math.tanh %22 : vector<2x128xf32>
    %29 = arith.select %14, %28, %27 : vector<2x128xi1>, vector<2x128xf32>
    %30 = vector.extract_strided_slice %29 {offsets = [0, 0], sizes = [2, 32], strides = [1, 1]} : vector<2x128xf32> to vector<2x32xf32>
    %31 = vector.extract_strided_slice %29 {offsets = [0, 32], sizes = [2, 32], strides = [1, 1]} : vector<2x128xf32> to vector<2x32xf32>
    %32 = vector.extract_strided_slice %29 {offsets = [0, 64], sizes = [2, 32], strides = [1, 1]} : vector<2x128xf32> to vector<2x32xf32>
    %33 = vector.extract_strided_slice %29 {offsets = [0, 96], sizes = [2, 32], strides = [1, 1]} : vector<2x128xf32> to vector<2x32xf32>
    %34 = arith.mulf %31, %19 : vector<2x32xf32>
    %35 = arith.mulf %30, %32 : vector<2x32xf32>
    %36 = arith.addf %34, %35 : vector<2x32xf32>
    %37 = math.tanh %36 : vector<2x32xf32>
    %38 = arith.mulf %33, %37 : vector<2x32xf32>
    %39 = vector.extract_strided_slice %17 {offsets = [2, 0], sizes = [2, 128], strides = [1, 1]} : vector<16x128xf32> to vector<2x128xf32>
    %cst_14 = arith.constant dense<0.000000e+00> : vector<2x128xf32>
    %40 = tpu.matmul %38, %2, %cst_14 {dimension_numbers = #tpu.dot_dimension_numbers<[1], [0], [0], [1], [0, 0, 1, 1], [], []>} : vector<2x32xf32>, vector<32x128xf32>, vector<2x128xf32> -> vector<2x128xf32>
    %41 = arith.addf %39, %40 : vector<2x128xf32>
    %42 = arith.negf %41 : vector<2x128xf32>
    %43 = math.exp %42 : vector<2x128xf32>
    %cst_15 = arith.constant 1.000000e+00 : f32
    %44 = vector.broadcast %cst_15 : f32 to vector<2x128xf32>
    %45 = arith.addf %44, %43 : vector<2x128xf32>
    %46 = arith.divf %44, %45 : vector<2x128xf32>
    %47 = math.tanh %41 : vector<2x128xf32>
    %48 = arith.select %14, %47, %46 : vector<2x128xi1>, vector<2x128xf32>
    %49 = vector.extract_strided_slice %48 {offsets = [0, 0], sizes = [2, 32], strides = [1, 1]} : vector<2x128xf32> to vector<2x32xf32>
    %50 = vector.extract_strided_slice %48 {offsets = [0, 32], sizes = [2, 32], strides = [1, 1]} : vector<2x128xf32> to vector<2x32xf32>
    %51 = vector.extract_strided_slice %48 {offsets = [0, 64], sizes = [2, 32], strides = [1, 1]} : vector<2x128xf32> to vector<2x32xf32>
    %52 = vector.extract_strided_slice %48 {offsets = [0, 96], sizes = [2, 32], strides = [1, 1]} : vector<2x128xf32> to vector<2x32xf32>
    %53 = arith.mulf %50, %36 : vector<2x32xf32>
    %54 = arith.mulf %49, %51 : vector<2x32xf32>
    %55 = arith.addf %53, %54 : vector<2x32xf32>
    %56 = math.tanh %55 : vector<2x32xf32>
    %57 = arith.mulf %52, %56 : vector<2x32xf32>
    %58 = vector.extract_strided_slice %17 {offsets = [4, 0], sizes = [2, 128], strides = [1, 1]} : vector<16x128xf32> to vector<2x128xf32>
    %cst_16 = arith.constant dense<0.000000e+00> : vector<2x128xf32>
    %59 = tpu.matmul %57, %2, %cst_16 {dimension_numbers = #tpu.dot_dimension_numbers<[1], [0], [0], [1], [0, 0, 1, 1], [], []>} : vector<2x32xf32>, vector<32x128xf32>, vector<2x128xf32> -> vector<2x128xf32>
    %60 = arith.addf %58, %59 : vector<2x128xf32>
    %61 = arith.negf %60 : vector<2x128xf32>
    %62 = math.exp %61 : vector<2x128xf32>
    %cst_17 = arith.constant 1.000000e+00 : f32
    %63 = vector.broadcast %cst_17 : f32 to vector<2x128xf32>
    %64 = arith.addf %63, %62 : vector<2x128xf32>
    %65 = arith.divf %63, %64 : vector<2x128xf32>
    %66 = math.tanh %60 : vector<2x128xf32>
    %67 = arith.select %14, %66, %65 : vector<2x128xi1>, vector<2x128xf32>
    %68 = vector.extract_strided_slice %67 {offsets = [0, 0], sizes = [2, 32], strides = [1, 1]} : vector<2x128xf32> to vector<2x32xf32>
    %69 = vector.extract_strided_slice %67 {offsets = [0, 32], sizes = [2, 32], strides = [1, 1]} : vector<2x128xf32> to vector<2x32xf32>
    %70 = vector.extract_strided_slice %67 {offsets = [0, 64], sizes = [2, 32], strides = [1, 1]} : vector<2x128xf32> to vector<2x32xf32>
    %71 = vector.extract_strided_slice %67 {offsets = [0, 96], sizes = [2, 32], strides = [1, 1]} : vector<2x128xf32> to vector<2x32xf32>
    %72 = arith.mulf %69, %55 : vector<2x32xf32>
    %73 = arith.mulf %68, %70 : vector<2x32xf32>
    %74 = arith.addf %72, %73 : vector<2x32xf32>
    %75 = math.tanh %74 : vector<2x32xf32>
    %76 = arith.mulf %71, %75 : vector<2x32xf32>
    %77 = vector.extract_strided_slice %17 {offsets = [6, 0], sizes = [2, 128], strides = [1, 1]} : vector<16x128xf32> to vector<2x128xf32>
    %cst_18 = arith.constant dense<0.000000e+00> : vector<2x128xf32>
    %78 = tpu.matmul %76, %2, %cst_18 {dimension_numbers = #tpu.dot_dimension_numbers<[1], [0], [0], [1], [0, 0, 1, 1], [], []>} : vector<2x32xf32>, vector<32x128xf32>, vector<2x128xf32> -> vector<2x128xf32>
    %79 = arith.addf %77, %78 : vector<2x128xf32>
    %80 = arith.negf %79 : vector<2x128xf32>
    %81 = math.exp %80 : vector<2x128xf32>
    %cst_19 = arith.constant 1.000000e+00 : f32
    %82 = vector.broadcast %cst_19 : f32 to vector<2x128xf32>
    %83 = arith.addf %82, %81 : vector<2x128xf32>
    %84 = arith.divf %82, %83 : vector<2x128xf32>
    %85 = math.tanh %79 : vector<2x128xf32>
    %86 = arith.select %14, %85, %84 : vector<2x128xi1>, vector<2x128xf32>
    %87 = vector.extract_strided_slice %86 {offsets = [0, 0], sizes = [2, 32], strides = [1, 1]} : vector<2x128xf32> to vector<2x32xf32>
    %88 = vector.extract_strided_slice %86 {offsets = [0, 32], sizes = [2, 32], strides = [1, 1]} : vector<2x128xf32> to vector<2x32xf32>
    %89 = vector.extract_strided_slice %86 {offsets = [0, 64], sizes = [2, 32], strides = [1, 1]} : vector<2x128xf32> to vector<2x32xf32>
    %90 = vector.extract_strided_slice %86 {offsets = [0, 96], sizes = [2, 32], strides = [1, 1]} : vector<2x128xf32> to vector<2x32xf32>
    %91 = arith.mulf %88, %74 : vector<2x32xf32>
    %92 = arith.mulf %87, %89 : vector<2x32xf32>
    %93 = arith.addf %91, %92 : vector<2x32xf32>
    %94 = math.tanh %93 : vector<2x32xf32>
    %95 = arith.mulf %90, %94 : vector<2x32xf32>
    %96 = vector.extract_strided_slice %17 {offsets = [8, 0], sizes = [2, 128], strides = [1, 1]} : vector<16x128xf32> to vector<2x128xf32>
    %cst_20 = arith.constant dense<0.000000e+00> : vector<2x128xf32>
    %97 = tpu.matmul %95, %2, %cst_20 {dimension_numbers = #tpu.dot_dimension_numbers<[1], [0], [0], [1], [0, 0, 1, 1], [], []>} : vector<2x32xf32>, vector<32x128xf32>, vector<2x128xf32> -> vector<2x128xf32>
    %98 = arith.addf %96, %97 : vector<2x128xf32>
    %99 = arith.negf %98 : vector<2x128xf32>
    %100 = math.exp %99 : vector<2x128xf32>
    %cst_21 = arith.constant 1.000000e+00 : f32
    %101 = vector.broadcast %cst_21 : f32 to vector<2x128xf32>
    %102 = arith.addf %101, %100 : vector<2x128xf32>
    %103 = arith.divf %101, %102 : vector<2x128xf32>
    %104 = math.tanh %98 : vector<2x128xf32>
    %105 = arith.select %14, %104, %103 : vector<2x128xi1>, vector<2x128xf32>
    %106 = vector.extract_strided_slice %105 {offsets = [0, 0], sizes = [2, 32], strides = [1, 1]} : vector<2x128xf32> to vector<2x32xf32>
    %107 = vector.extract_strided_slice %105 {offsets = [0, 32], sizes = [2, 32], strides = [1, 1]} : vector<2x128xf32> to vector<2x32xf32>
    %108 = vector.extract_strided_slice %105 {offsets = [0, 64], sizes = [2, 32], strides = [1, 1]} : vector<2x128xf32> to vector<2x32xf32>
    %109 = vector.extract_strided_slice %105 {offsets = [0, 96], sizes = [2, 32], strides = [1, 1]} : vector<2x128xf32> to vector<2x32xf32>
    %110 = arith.mulf %107, %93 : vector<2x32xf32>
    %111 = arith.mulf %106, %108 : vector<2x32xf32>
    %112 = arith.addf %110, %111 : vector<2x32xf32>
    %113 = math.tanh %112 : vector<2x32xf32>
    %114 = arith.mulf %109, %113 : vector<2x32xf32>
    %115 = vector.extract_strided_slice %17 {offsets = [10, 0], sizes = [2, 128], strides = [1, 1]} : vector<16x128xf32> to vector<2x128xf32>
    %cst_22 = arith.constant dense<0.000000e+00> : vector<2x128xf32>
    %116 = tpu.matmul %114, %2, %cst_22 {dimension_numbers = #tpu.dot_dimension_numbers<[1], [0], [0], [1], [0, 0, 1, 1], [], []>} : vector<2x32xf32>, vector<32x128xf32>, vector<2x128xf32> -> vector<2x128xf32>
    %117 = arith.addf %115, %116 : vector<2x128xf32>
    %118 = arith.negf %117 : vector<2x128xf32>
    %119 = math.exp %118 : vector<2x128xf32>
    %cst_23 = arith.constant 1.000000e+00 : f32
    %120 = vector.broadcast %cst_23 : f32 to vector<2x128xf32>
    %121 = arith.addf %120, %119 : vector<2x128xf32>
    %122 = arith.divf %120, %121 : vector<2x128xf32>
    %123 = math.tanh %117 : vector<2x128xf32>
    %124 = arith.select %14, %123, %122 : vector<2x128xi1>, vector<2x128xf32>
    %125 = vector.extract_strided_slice %124 {offsets = [0, 0], sizes = [2, 32], strides = [1, 1]} : vector<2x128xf32> to vector<2x32xf32>
    %126 = vector.extract_strided_slice %124 {offsets = [0, 32], sizes = [2, 32], strides = [1, 1]} : vector<2x128xf32> to vector<2x32xf32>
    %127 = vector.extract_strided_slice %124 {offsets = [0, 64], sizes = [2, 32], strides = [1, 1]} : vector<2x128xf32> to vector<2x32xf32>
    %128 = vector.extract_strided_slice %124 {offsets = [0, 96], sizes = [2, 32], strides = [1, 1]} : vector<2x128xf32> to vector<2x32xf32>
    %129 = arith.mulf %126, %112 : vector<2x32xf32>
    %130 = arith.mulf %125, %127 : vector<2x32xf32>
    %131 = arith.addf %129, %130 : vector<2x32xf32>
    %132 = math.tanh %131 : vector<2x32xf32>
    %133 = arith.mulf %128, %132 : vector<2x32xf32>
    %134 = vector.extract_strided_slice %17 {offsets = [12, 0], sizes = [2, 128], strides = [1, 1]} : vector<16x128xf32> to vector<2x128xf32>
    %cst_24 = arith.constant dense<0.000000e+00> : vector<2x128xf32>
    %135 = tpu.matmul %133, %2, %cst_24 {dimension_numbers = #tpu.dot_dimension_numbers<[1], [0], [0], [1], [0, 0, 1, 1], [], []>} : vector<2x32xf32>, vector<32x128xf32>, vector<2x128xf32> -> vector<2x128xf32>
    %136 = arith.addf %134, %135 : vector<2x128xf32>
    %137 = arith.negf %136 : vector<2x128xf32>
    %138 = math.exp %137 : vector<2x128xf32>
    %cst_25 = arith.constant 1.000000e+00 : f32
    %139 = vector.broadcast %cst_25 : f32 to vector<2x128xf32>
    %140 = arith.addf %139, %138 : vector<2x128xf32>
    %141 = arith.divf %139, %140 : vector<2x128xf32>
    %142 = math.tanh %136 : vector<2x128xf32>
    %143 = arith.select %14, %142, %141 : vector<2x128xi1>, vector<2x128xf32>
    %144 = vector.extract_strided_slice %143 {offsets = [0, 0], sizes = [2, 32], strides = [1, 1]} : vector<2x128xf32> to vector<2x32xf32>
    %145 = vector.extract_strided_slice %143 {offsets = [0, 32], sizes = [2, 32], strides = [1, 1]} : vector<2x128xf32> to vector<2x32xf32>
    %146 = vector.extract_strided_slice %143 {offsets = [0, 64], sizes = [2, 32], strides = [1, 1]} : vector<2x128xf32> to vector<2x32xf32>
    %147 = vector.extract_strided_slice %143 {offsets = [0, 96], sizes = [2, 32], strides = [1, 1]} : vector<2x128xf32> to vector<2x32xf32>
    %148 = arith.mulf %145, %131 : vector<2x32xf32>
    %149 = arith.mulf %144, %146 : vector<2x32xf32>
    %150 = arith.addf %148, %149 : vector<2x32xf32>
    %151 = math.tanh %150 : vector<2x32xf32>
    %152 = arith.mulf %147, %151 : vector<2x32xf32>
    %153 = vector.extract_strided_slice %17 {offsets = [14, 0], sizes = [2, 128], strides = [1, 1]} : vector<16x128xf32> to vector<2x128xf32>
    %cst_26 = arith.constant dense<0.000000e+00> : vector<2x128xf32>
    %154 = tpu.matmul %152, %2, %cst_26 {dimension_numbers = #tpu.dot_dimension_numbers<[1], [0], [0], [1], [0, 0, 1, 1], [], []>} : vector<2x32xf32>, vector<32x128xf32>, vector<2x128xf32> -> vector<2x128xf32>
    %155 = arith.addf %153, %154 : vector<2x128xf32>
    %156 = arith.negf %155 : vector<2x128xf32>
    %157 = math.exp %156 : vector<2x128xf32>
    %cst_27 = arith.constant 1.000000e+00 : f32
    %158 = vector.broadcast %cst_27 : f32 to vector<2x128xf32>
    %159 = arith.addf %158, %157 : vector<2x128xf32>
    %160 = arith.divf %158, %159 : vector<2x128xf32>
    %161 = math.tanh %155 : vector<2x128xf32>
    %162 = arith.select %14, %161, %160 : vector<2x128xi1>, vector<2x128xf32>
    %163 = vector.extract_strided_slice %162 {offsets = [0, 0], sizes = [2, 32], strides = [1, 1]} : vector<2x128xf32> to vector<2x32xf32>
    %164 = vector.extract_strided_slice %162 {offsets = [0, 32], sizes = [2, 32], strides = [1, 1]} : vector<2x128xf32> to vector<2x32xf32>
    %165 = vector.extract_strided_slice %162 {offsets = [0, 64], sizes = [2, 32], strides = [1, 1]} : vector<2x128xf32> to vector<2x32xf32>
    %166 = vector.extract_strided_slice %162 {offsets = [0, 96], sizes = [2, 32], strides = [1, 1]} : vector<2x128xf32> to vector<2x32xf32>
    %167 = arith.mulf %164, %150 : vector<2x32xf32>
    %168 = arith.mulf %163, %165 : vector<2x32xf32>
    %169 = arith.addf %167, %168 : vector<2x32xf32>
    %170 = math.tanh %169 : vector<2x32xf32>
    %171 = arith.mulf %166, %170 : vector<2x32xf32>
    %cst_28 = arith.constant dense<0.000000e+00> : vector<2x128xf32>
    %172 = tpu.matmul %171, %4, %cst_28 {dimension_numbers = #tpu.dot_dimension_numbers<[1], [0], [0], [1], [0, 0, 1, 1], [], []>} : vector<2x32xf32>, vector<32x128xf32>, vector<2x128xf32> -> vector<2x128xf32>
    %173 = vector.broadcast %6 : vector<1x128xf32> to vector<2x128xf32>
    %174 = arith.addf %172, %173 : vector<2x128xf32>
    %cst_29 = arith.constant 0.000000e+00 : f32
    %175 = vector.broadcast %cst_29 : f32 to vector<2x32xf32>
    %cst_30 = arith.constant 0.000000e+00 : f32
    %176 = vector.broadcast %cst_30 : f32 to vector<2x32xf32>
    %cst_31 = arith.constant dense<0.000000e+00> : vector<2x128xf32>
    %177 = tpu.matmul %175, %5, %cst_31 {dimension_numbers = #tpu.dot_dimension_numbers<[1], [0], [0], [1], [0, 0, 1, 1], [], []>} : vector<2x32xf32>, vector<32x128xf32>, vector<2x128xf32> -> vector<2x128xf32>
    %178 = arith.addf %174, %177 : vector<2x128xf32>
    %179 = arith.negf %178 : vector<2x128xf32>
    %180 = math.exp %179 : vector<2x128xf32>
    %cst_32 = arith.constant 1.000000e+00 : f32
    %181 = vector.broadcast %cst_32 : f32 to vector<2x128xf32>
    %182 = arith.addf %181, %180 : vector<2x128xf32>
    %183 = arith.divf %181, %182 : vector<2x128xf32>
    %184 = math.tanh %178 : vector<2x128xf32>
    %185 = arith.select %14, %184, %183 : vector<2x128xi1>, vector<2x128xf32>
    %186 = vector.extract_strided_slice %185 {offsets = [0, 0], sizes = [2, 32], strides = [1, 1]} : vector<2x128xf32> to vector<2x32xf32>
    %187 = vector.extract_strided_slice %185 {offsets = [0, 32], sizes = [2, 32], strides = [1, 1]} : vector<2x128xf32> to vector<2x32xf32>
    %188 = vector.extract_strided_slice %185 {offsets = [0, 64], sizes = [2, 32], strides = [1, 1]} : vector<2x128xf32> to vector<2x32xf32>
    %189 = vector.extract_strided_slice %185 {offsets = [0, 96], sizes = [2, 32], strides = [1, 1]} : vector<2x128xf32> to vector<2x32xf32>
    %190 = arith.mulf %187, %176 : vector<2x32xf32>
    %191 = arith.mulf %186, %188 : vector<2x32xf32>
    %192 = arith.addf %190, %191 : vector<2x32xf32>
    %193 = math.tanh %192 : vector<2x32xf32>
    %194 = arith.mulf %189, %193 : vector<2x32xf32>
    %cst_33 = arith.constant dense<0.000000e+00> : vector<2x128xf32>
    %195 = tpu.matmul %194, %5, %cst_33 {dimension_numbers = #tpu.dot_dimension_numbers<[1], [0], [0], [1], [0, 0, 1, 1], [], []>} : vector<2x32xf32>, vector<32x128xf32>, vector<2x128xf32> -> vector<2x128xf32>
    %196 = arith.addf %174, %195 : vector<2x128xf32>
    %197 = arith.negf %196 : vector<2x128xf32>
    %198 = math.exp %197 : vector<2x128xf32>
    %cst_34 = arith.constant 1.000000e+00 : f32
    %199 = vector.broadcast %cst_34 : f32 to vector<2x128xf32>
    %200 = arith.addf %199, %198 : vector<2x128xf32>
    %201 = arith.divf %199, %200 : vector<2x128xf32>
    %202 = math.tanh %196 : vector<2x128xf32>
    %203 = arith.select %14, %202, %201 : vector<2x128xi1>, vector<2x128xf32>
    %204 = vector.extract_strided_slice %203 {offsets = [0, 0], sizes = [2, 32], strides = [1, 1]} : vector<2x128xf32> to vector<2x32xf32>
    %205 = vector.extract_strided_slice %203 {offsets = [0, 32], sizes = [2, 32], strides = [1, 1]} : vector<2x128xf32> to vector<2x32xf32>
    %206 = vector.extract_strided_slice %203 {offsets = [0, 64], sizes = [2, 32], strides = [1, 1]} : vector<2x128xf32> to vector<2x32xf32>
    %207 = vector.extract_strided_slice %203 {offsets = [0, 96], sizes = [2, 32], strides = [1, 1]} : vector<2x128xf32> to vector<2x32xf32>
    %208 = arith.mulf %205, %192 : vector<2x32xf32>
    %209 = arith.mulf %204, %206 : vector<2x32xf32>
    %210 = arith.addf %208, %209 : vector<2x32xf32>
    %211 = math.tanh %210 : vector<2x32xf32>
    %212 = arith.mulf %207, %211 : vector<2x32xf32>
    %cst_35 = arith.constant dense<0.000000e+00> : vector<2x128xf32>
    %213 = tpu.matmul %212, %5, %cst_35 {dimension_numbers = #tpu.dot_dimension_numbers<[1], [0], [0], [1], [0, 0, 1, 1], [], []>} : vector<2x32xf32>, vector<32x128xf32>, vector<2x128xf32> -> vector<2x128xf32>
    %214 = arith.addf %174, %213 : vector<2x128xf32>
    %215 = arith.negf %214 : vector<2x128xf32>
    %216 = math.exp %215 : vector<2x128xf32>
    %cst_36 = arith.constant 1.000000e+00 : f32
    %217 = vector.broadcast %cst_36 : f32 to vector<2x128xf32>
    %218 = arith.addf %217, %216 : vector<2x128xf32>
    %219 = arith.divf %217, %218 : vector<2x128xf32>
    %220 = math.tanh %214 : vector<2x128xf32>
    %221 = arith.select %14, %220, %219 : vector<2x128xi1>, vector<2x128xf32>
    %222 = vector.extract_strided_slice %221 {offsets = [0, 0], sizes = [2, 32], strides = [1, 1]} : vector<2x128xf32> to vector<2x32xf32>
    %223 = vector.extract_strided_slice %221 {offsets = [0, 32], sizes = [2, 32], strides = [1, 1]} : vector<2x128xf32> to vector<2x32xf32>
    %224 = vector.extract_strided_slice %221 {offsets = [0, 64], sizes = [2, 32], strides = [1, 1]} : vector<2x128xf32> to vector<2x32xf32>
    %225 = vector.extract_strided_slice %221 {offsets = [0, 96], sizes = [2, 32], strides = [1, 1]} : vector<2x128xf32> to vector<2x32xf32>
    %226 = arith.mulf %223, %210 : vector<2x32xf32>
    %227 = arith.mulf %222, %224 : vector<2x32xf32>
    %228 = arith.addf %226, %227 : vector<2x32xf32>
    %229 = math.tanh %228 : vector<2x32xf32>
    %230 = arith.mulf %225, %229 : vector<2x32xf32>
    %cst_37 = arith.constant dense<0.000000e+00> : vector<2x128xf32>
    %231 = tpu.matmul %230, %5, %cst_37 {dimension_numbers = #tpu.dot_dimension_numbers<[1], [0], [0], [1], [0, 0, 1, 1], [], []>} : vector<2x32xf32>, vector<32x128xf32>, vector<2x128xf32> -> vector<2x128xf32>
    %232 = arith.addf %174, %231 : vector<2x128xf32>
    %233 = arith.negf %232 : vector<2x128xf32>
    %234 = math.exp %233 : vector<2x128xf32>
    %cst_38 = arith.constant 1.000000e+00 : f32
    %235 = vector.broadcast %cst_38 : f32 to vector<2x128xf32>
    %236 = arith.addf %235, %234 : vector<2x128xf32>
    %237 = arith.divf %235, %236 : vector<2x128xf32>
    %238 = math.tanh %232 : vector<2x128xf32>
    %239 = arith.select %14, %238, %237 : vector<2x128xi1>, vector<2x128xf32>
    %240 = vector.extract_strided_slice %239 {offsets = [0, 0], sizes = [2, 32], strides = [1, 1]} : vector<2x128xf32> to vector<2x32xf32>
    %241 = vector.extract_strided_slice %239 {offsets = [0, 32], sizes = [2, 32], strides = [1, 1]} : vector<2x128xf32> to vector<2x32xf32>
    %242 = vector.extract_strided_slice %239 {offsets = [0, 64], sizes = [2, 32], strides = [1, 1]} : vector<2x128xf32> to vector<2x32xf32>
    %243 = vector.extract_strided_slice %239 {offsets = [0, 96], sizes = [2, 32], strides = [1, 1]} : vector<2x128xf32> to vector<2x32xf32>
    %244 = arith.mulf %241, %228 : vector<2x32xf32>
    %245 = arith.mulf %240, %242 : vector<2x32xf32>
    %246 = arith.addf %244, %245 : vector<2x32xf32>
    %247 = math.tanh %246 : vector<2x32xf32>
    %248 = arith.mulf %243, %247 : vector<2x32xf32>
    %cst_39 = arith.constant dense<0.000000e+00> : vector<2x128xf32>
    %249 = tpu.matmul %248, %5, %cst_39 {dimension_numbers = #tpu.dot_dimension_numbers<[1], [0], [0], [1], [0, 0, 1, 1], [], []>} : vector<2x32xf32>, vector<32x128xf32>, vector<2x128xf32> -> vector<2x128xf32>
    %250 = arith.addf %174, %249 : vector<2x128xf32>
    %251 = arith.negf %250 : vector<2x128xf32>
    %252 = math.exp %251 : vector<2x128xf32>
    %cst_40 = arith.constant 1.000000e+00 : f32
    %253 = vector.broadcast %cst_40 : f32 to vector<2x128xf32>
    %254 = arith.addf %253, %252 : vector<2x128xf32>
    %255 = arith.divf %253, %254 : vector<2x128xf32>
    %256 = math.tanh %250 : vector<2x128xf32>
    %257 = arith.select %14, %256, %255 : vector<2x128xi1>, vector<2x128xf32>
    %258 = vector.extract_strided_slice %257 {offsets = [0, 0], sizes = [2, 32], strides = [1, 1]} : vector<2x128xf32> to vector<2x32xf32>
    %259 = vector.extract_strided_slice %257 {offsets = [0, 32], sizes = [2, 32], strides = [1, 1]} : vector<2x128xf32> to vector<2x32xf32>
    %260 = vector.extract_strided_slice %257 {offsets = [0, 64], sizes = [2, 32], strides = [1, 1]} : vector<2x128xf32> to vector<2x32xf32>
    %261 = vector.extract_strided_slice %257 {offsets = [0, 96], sizes = [2, 32], strides = [1, 1]} : vector<2x128xf32> to vector<2x32xf32>
    %262 = arith.mulf %259, %246 : vector<2x32xf32>
    %263 = arith.mulf %258, %260 : vector<2x32xf32>
    %264 = arith.addf %262, %263 : vector<2x32xf32>
    %265 = math.tanh %264 : vector<2x32xf32>
    %266 = arith.mulf %261, %265 : vector<2x32xf32>
    %cst_41 = arith.constant dense<0.000000e+00> : vector<2x128xf32>
    %267 = tpu.matmul %266, %5, %cst_41 {dimension_numbers = #tpu.dot_dimension_numbers<[1], [0], [0], [1], [0, 0, 1, 1], [], []>} : vector<2x32xf32>, vector<32x128xf32>, vector<2x128xf32> -> vector<2x128xf32>
    %268 = arith.addf %174, %267 : vector<2x128xf32>
    %269 = arith.negf %268 : vector<2x128xf32>
    %270 = math.exp %269 : vector<2x128xf32>
    %cst_42 = arith.constant 1.000000e+00 : f32
    %271 = vector.broadcast %cst_42 : f32 to vector<2x128xf32>
    %272 = arith.addf %271, %270 : vector<2x128xf32>
    %273 = arith.divf %271, %272 : vector<2x128xf32>
    %274 = math.tanh %268 : vector<2x128xf32>
    %275 = arith.select %14, %274, %273 : vector<2x128xi1>, vector<2x128xf32>
    %276 = vector.extract_strided_slice %275 {offsets = [0, 0], sizes = [2, 32], strides = [1, 1]} : vector<2x128xf32> to vector<2x32xf32>
    %277 = vector.extract_strided_slice %275 {offsets = [0, 32], sizes = [2, 32], strides = [1, 1]} : vector<2x128xf32> to vector<2x32xf32>
    %278 = vector.extract_strided_slice %275 {offsets = [0, 64], sizes = [2, 32], strides = [1, 1]} : vector<2x128xf32> to vector<2x32xf32>
    %279 = vector.extract_strided_slice %275 {offsets = [0, 96], sizes = [2, 32], strides = [1, 1]} : vector<2x128xf32> to vector<2x32xf32>
    %280 = arith.mulf %277, %264 : vector<2x32xf32>
    %281 = arith.mulf %276, %278 : vector<2x32xf32>
    %282 = arith.addf %280, %281 : vector<2x32xf32>
    %283 = math.tanh %282 : vector<2x32xf32>
    %284 = arith.mulf %279, %283 : vector<2x32xf32>
    %cst_43 = arith.constant dense<0.000000e+00> : vector<2x128xf32>
    %285 = tpu.matmul %284, %5, %cst_43 {dimension_numbers = #tpu.dot_dimension_numbers<[1], [0], [0], [1], [0, 0, 1, 1], [], []>} : vector<2x32xf32>, vector<32x128xf32>, vector<2x128xf32> -> vector<2x128xf32>
    %286 = arith.addf %174, %285 : vector<2x128xf32>
    %287 = arith.negf %286 : vector<2x128xf32>
    %288 = math.exp %287 : vector<2x128xf32>
    %cst_44 = arith.constant 1.000000e+00 : f32
    %289 = vector.broadcast %cst_44 : f32 to vector<2x128xf32>
    %290 = arith.addf %289, %288 : vector<2x128xf32>
    %291 = arith.divf %289, %290 : vector<2x128xf32>
    %292 = math.tanh %286 : vector<2x128xf32>
    %293 = arith.select %14, %292, %291 : vector<2x128xi1>, vector<2x128xf32>
    %294 = vector.extract_strided_slice %293 {offsets = [0, 0], sizes = [2, 32], strides = [1, 1]} : vector<2x128xf32> to vector<2x32xf32>
    %295 = vector.extract_strided_slice %293 {offsets = [0, 32], sizes = [2, 32], strides = [1, 1]} : vector<2x128xf32> to vector<2x32xf32>
    %296 = vector.extract_strided_slice %293 {offsets = [0, 64], sizes = [2, 32], strides = [1, 1]} : vector<2x128xf32> to vector<2x32xf32>
    %297 = vector.extract_strided_slice %293 {offsets = [0, 96], sizes = [2, 32], strides = [1, 1]} : vector<2x128xf32> to vector<2x32xf32>
    %298 = arith.mulf %295, %282 : vector<2x32xf32>
    %299 = arith.mulf %294, %296 : vector<2x32xf32>
    %300 = arith.addf %298, %299 : vector<2x32xf32>
    %301 = math.tanh %300 : vector<2x32xf32>
    %302 = arith.mulf %297, %301 : vector<2x32xf32>
    %cst_45 = arith.constant dense<0.000000e+00> : vector<2x128xf32>
    %303 = tpu.matmul %302, %5, %cst_45 {dimension_numbers = #tpu.dot_dimension_numbers<[1], [0], [0], [1], [0, 0, 1, 1], [], []>} : vector<2x32xf32>, vector<32x128xf32>, vector<2x128xf32> -> vector<2x128xf32>
    %304 = arith.addf %174, %303 : vector<2x128xf32>
    %305 = arith.negf %304 : vector<2x128xf32>
    %306 = math.exp %305 : vector<2x128xf32>
    %cst_46 = arith.constant 1.000000e+00 : f32
    %307 = vector.broadcast %cst_46 : f32 to vector<2x128xf32>
    %308 = arith.addf %307, %306 : vector<2x128xf32>
    %309 = arith.divf %307, %308 : vector<2x128xf32>
    %310 = math.tanh %304 : vector<2x128xf32>
    %311 = arith.select %14, %310, %309 : vector<2x128xi1>, vector<2x128xf32>
    %312 = vector.extract_strided_slice %311 {offsets = [0, 0], sizes = [2, 32], strides = [1, 1]} : vector<2x128xf32> to vector<2x32xf32>
    %313 = vector.extract_strided_slice %311 {offsets = [0, 32], sizes = [2, 32], strides = [1, 1]} : vector<2x128xf32> to vector<2x32xf32>
    %314 = vector.extract_strided_slice %311 {offsets = [0, 64], sizes = [2, 32], strides = [1, 1]} : vector<2x128xf32> to vector<2x32xf32>
    %315 = vector.extract_strided_slice %311 {offsets = [0, 96], sizes = [2, 32], strides = [1, 1]} : vector<2x128xf32> to vector<2x32xf32>
    %316 = arith.mulf %313, %300 : vector<2x32xf32>
    %317 = arith.mulf %312, %314 : vector<2x32xf32>
    %318 = arith.addf %316, %317 : vector<2x32xf32>
    %319 = math.tanh %318 : vector<2x32xf32>
    %320 = arith.mulf %315, %319 : vector<2x32xf32>
    %321 = tpu.concatenate %194, %212, %230, %248, %266, %284, %302, %320 in 0 : vector<2x32xf32>, vector<2x32xf32>, vector<2x32xf32>, vector<2x32xf32>, vector<2x32xf32>, vector<2x32xf32>, vector<2x32xf32>, vector<2x32xf32> -> vector<16x32xf32>
    %cst_47 = arith.constant dense<0.000000e+00> : vector<16x128xf32>
    %322 = tpu.matmul %321, %7, %cst_47 {dimension_numbers = #tpu.dot_dimension_numbers<[1], [0], [0], [1], [0, 0, 1, 1], [], []>} : vector<16x32xf32>, vector<32x128xf32>, vector<16x128xf32> -> vector<16x128xf32>
    %323 = vector.broadcast %8 : vector<1x128xf32> to vector<16x128xf32>
    %324 = arith.addf %322, %323 : vector<16x128xf32>
    %325 = vector.extract_strided_slice %324 {offsets = [0, 0], sizes = [16, 4], strides = [1, 1]} : vector<16x128xf32> to vector<16x4xf32>
    %c0_48 = arith.constant 0 : index
    %c0_49 = arith.constant 0 : index
    %326 = vector.load %arg2[%c0_48, %c0_49] : memref<16x4xf32, #tpu.memory_space<vmem>>, vector<16x4xf32>
    tpu.vector_store %arg2[%c0_48, %c0_49], %325 {strides = array<i32>} : memref<16x4xf32, #tpu.memory_space<vmem>>, vector<16x4xf32>,
    return
  }
}

</mosaic_0001>

<llo_original>
// kernel: tpu_custom_call.1
$region0: #{tpu_custom_call.1}
  #allocation0 [shape = 'u32[]', space=smem, size = 0x4, offset = 0x4, fixed_abs, tag = 'smem constant byte address 0x4 - core index']
  #allocation1 [shape = 'u32[144,128]{1,0:T(1,128)}', space=vmem, size = 0x12000, scoped, tag = 'internal scratch']
  %s0 = inlined_call_operand.vmem [shape: f32[16,4], index: 0, kind: input, shape index: {}]
  %s1 = inlined_call_operand.hbm [shape: f32[136,128], index: 1, kind: input, shape index: {}]
  %s2 = inlined_call_operand.vmem [shape: f32[16,4], index: 2, kind: output, shape index: {}]
  %s3 = sld [smem:[#allocation0]]
  $region22: #{tpu_custom_call.1} parent=0
    _
  %s5 = ssub.s32 1, %s3
  %s6 = scalar_select 0, %s5, %s3
  $region1: #{tpu_custom_call.1} parent=0
    #allocation2 [shape = 'u8[69632]{0}', space=vmem, size = 0x11000, scoped, tag = 'input window, operand 1, single buffered']
    #allocation3 [shape = 's32[1]{0}', space=sflag, size = 0x4, scoped, tag = 'scoped memory for tpu_custom_call.1']
    %7 = vsyncpa [#allocation3], 0
    // Predicated region
    $region2: #{tpu_custom_call.1} parent=1 // pred_check
      _
    $region3: #{tpu_custom_call.1} parent=1 // pred_check_branch
      %9 = sbr.rel (0) target = $region5
    $region4: #{tpu_custom_call.1} parent=1 // pred_region
      _
    $region5: #{tpu_custom_call.1} parent=1 // pred_fallthru
      _
    // Predicated region
    $region6: #{tpu_custom_call.1} parent=1 // pred_check
      _
    $region7: #{tpu_custom_call.1} parent=1 // pred_check_branch
      %11 = sbr.rel (0) target = $region9
    $region8: #{tpu_custom_call.1} parent=1 // pred_region
      %s13 = ssub.s32 2176, 2176
      %14 = vsyncadd [#allocation3], %s13
      %s15 = sshll.u32 [#allocation2], 4
      %s16 = int_to_ptr.vmem [resolvable:$true] %s15
      %21 = dma.hbm_to_vmem [thread:$0]  %s1, 2176, %s16, [#allocation3], 128, 128, 8
    $region9: #{tpu_custom_call.1} parent=1 // pred_fallthru
      _
    // Predicated region
    $region10: #{tpu_custom_call.1} parent=1 // pred_check
      _
    $region11: #{tpu_custom_call.1} parent=1 // pred_check_branch
      %23 = sbr.rel (0) target = $region13
    $region12: #{tpu_custom_call.1} parent=1 // pred_region
      %24 = dma.done [#allocation3], 2176
    $region13: #{tpu_custom_call.1} parent=1 // pred_fallthru
      _
    %v25 = vld [vmem:[%s0] sm:$0xff]
    %v26 = vld [vmem:[%s0 + $0x8] sm:$0xff]
    %v27 = vld [vmem:[#allocation2] sm:$0xf]
    %v28 = vld [vmem:[#allocation2 + $0x4] sm:$0xff]
    %v29 = vld [vmem:[#allocation2 + $0xc] sm:$0xff]
    %v30 = vld [vmem:[#allocation2 + $0x14] sm:$0xff]
    %v31 = vld [vmem:[#allocation2 + $0x1c] sm:$0xff]
    %v32 = vld [vmem:[#allocation2 + $0x24] sm:$0x1]
    %v33 = vld [vmem:[#allocation2 + $0x25] sm:$0xff]
    %v34 = vld [vmem:[#allocation2 + $0x2d] sm:$0xff]
    %v35 = vld [vmem:[#allocation2 + $0x35] sm:$0xff]
    %v36 = vld [vmem:[#allocation2 + $0x3d] sm:$0xff]
    %v37 = vld [vmem:[#allocation2 + $0x45] sm:$0xff]
    %v38 = vld [vmem:[#allocation2 + $0x4d] sm:$0xff]
    %v39 = vld [vmem:[#allocation2 + $0x55] sm:$0xff]
    %v40 = vld [vmem:[#allocation2 + $0x5d] sm:$0xff]
    %v41 = vld [vmem:[#allocation2 + $0x65] sm:$0x1]
    %v42 = vld [vmem:[#allocation2 + $0x66] sm:$0xff]
    %v43 = vld [vmem:[#allocation2 + $0x6e] sm:$0xff]
    %v44 = vld [vmem:[#allocation2 + $0x76] sm:$0xff]
    %v45 = vld [vmem:[#allocation2 + $0x7e] sm:$0xff]
    %v46 = vld [vmem:[#allocation2 + $0x86] sm:$0x1]
    %v47 = vlaneseq
    %v48 = vand.u32 %v47, 127
    %vm49 = vcmp.ge.s32.totalorder %v48, 64
    %vm50 = vcmp.lt.s32.totalorder %v48, 96
    %vm51 = vmand %vm49, %vm50
    %v52 = vlaneseq
    %v53 = vshrl.u32 %v52, 7
    %v54 = vsub.s32 0, %v53
    %v55 = vrot.slane %v32, %v54
    %vm56 = vcmask 31744
    %v58 = vsel %vm56, %v25, 0
    %v61 = vsel %vm56, %v26, 0
    %vm63 = vcmask 1043456
    %v65 = vsel %vm63, %v27, 0
    %67 = vmatprep.subr.mxu0 0.0
    %68 = vmatpush1.msra.mxu0 %v65
    %69 = vmatprep.subr.mxu0 0.0
    %70 = vmatpush1.msra.mxu0 0.0
    %71 = vmatprep.subr.mxu0 0.0
    %72 = vmatpush1.msra.mxu0 0.0
    %73 = vmatprep.subr.mxu0 0.0
    %74 = vmatpush1.msra.mxu0 0.0
    %75 = vmatprep.subr.mxu0 0.0
    %76 = vmatpush1.msra.mxu0 0.0
    %77 = vmatprep.subr.mxu0 0.0
    %78 = vmatpush1.msra.mxu0 0.0
    %79 = vmatprep.subr.mxu0 0.0
    %80 = vmatpush1.msra.mxu0 0.0
    %81 = vmatprep.subr.mxu0 0.0
    %82 = vmatpush1.msra.mxu0 0.0
    %83 = vmatprep.subr.mxu0 0.0
    %84 = vmatpush1.msra.mxu0 0.0
    %85 = vmatprep.subr.mxu0 0.0
    %86 = vmatpush1.msra.mxu0 0.0
    %87 = vmatprep.subr.mxu0 0.0
    %88 = vmatpush1.msra.mxu0 0.0
    %89 = vmatprep.subr.mxu0 0.0
    %90 = vmatpush1.msra.mxu0 0.0
    %91 = vmatprep.subr.mxu0 0.0
    %92 = vmatpush1.msra.mxu0 0.0
    %93 = vmatprep.subr.mxu0 0.0
    %94 = vmatpush1.msra.mxu0 0.0
    %95 = vmatprep.subr.mxu0 0.0
    %96 = vmatpush1.msra.mxu0 0.0
    %97 = vmatprep.subr.mxu0 0.0
    %98 = vmatpush1.msra.mxu0 0.0
    %99 = vmatprep.subr.mxu0 0.0
    %100 = vmatpush1.msra.mxu0 0.0
    %101 = vmatprep.subr.mxu0 0.0
    %102 = vmatpush1.msra.mxu0 0.0
    %103 = vmatprep.subr.mxu0 0.0
    %104 = vmatpush1.msra.mxu0 0.0
    %105 = vmatprep.subr.mxu0 0.0
    %106 = vmatpush1.msra.mxu0 0.0
    %107 = vmatprep.subr.mxu0 0.0
    %108 = vmatpush1.msra.mxu0 0.0
    %109 = vmatprep.subr.mxu0 0.0
    %110 = vmatpush1.msra.mxu0 0.0
    %111 = vmatprep.subr.mxu0 0.0
    %112 = vmatpush1.msra.mxu0 0.0
    %113 = vmatprep.subr.mxu0 0.0
    %114 = vmatpush1.msra.mxu0 0.0
    %115 = vmatprep.subr.mxu0 0.0
    %116 = vmatpush1.msra.mxu0 0.0
    %117 = vmatprep.subr.mxu0 0.0
    %118 = vmatpush1.msra.mxu0 0.0
    %119 = vmatprep.subr.mxu0 0.0
    %120 = vmatpush1.msra.mxu0 0.0
    %121 = vmatprep.subr.mxu0 0.0
    %122 = vmatpush1.msra.mxu0 0.0
    %123 = vmatprep.subr.mxu0 0.0
    %124 = vmatpush1.msra.mxu0 0.0
    %125 = vmatprep.subr.mxu0 0.0
    %126 = vmatpush1.msra.mxu0 0.0
    %127 = vmatprep.subr.mxu0 0.0
    %128 = vmatpush1.msra.mxu0 0.0
    %129 = vmatprep.subr.mxu0 0.0
    %130 = vmatpush1.msra.mxu0 0.0
    %131 = vmatprep.mubr.f32.mxu0 0.0
    %132 = vmatmul.mubr.f32.gmra.mrb[0].mxu0 %v58
    %v133 = vpop.f32.mrb[0].mxu0
    %v134 = vadd.f32 %v55, %v133
    %v135 = vpop.f32.mrb[0].mxu0
    %136 = vmatprep.mubr.f32.mxu0 0.0
    %137 = vmatmul.mubr.f32.gmra.mrb[0].mxu0 %v61
    %v138 = vpop.f32.mrb[0].mxu0
    %v139 = vadd.f32 %v55, %v138
    %v140 = vpop.f32.mrb[0].mxu0
    %141 = vdwg.mxu0
    %vm142 = vcmask 261120
    %v144 = vsel %vm142, 0.0, 0
    %146 = vmatprep.subr.mxu0 0.0
    %147 = vmatpush1.msra.mxu0 %v28
    %148 = vmatprep.subr.mxu0 0.0
    %149 = vmatpush1.msra.mxu0 %v29
    %150 = vmatprep.subr.mxu0 0.0
    %151 = vmatpush1.msra.mxu0 %v30
    %152 = vmatprep.subr.mxu0 0.0
    %153 = vmatpush1.msra.mxu0 %v31
    %154 = vmatprep.subr.mxu0 0.0
    %155 = vmatpush1.msra.mxu0 0.0
    %156 = vmatprep.subr.mxu0 0.0
    %157 = vmatpush1.msra.mxu0 0.0
    %158 = vmatprep.subr.mxu0 0.0
    %159 = vmatpush1.msra.mxu0 0.0
    %160 = vmatprep.subr.mxu0 0.0
    %161 = vmatpush1.msra.mxu0 0.0
    %162 = vmatprep.subr.mxu0 0.0
    %163 = vmatpush1.msra.mxu0 0.0
    %164 = vmatprep.subr.mxu0 0.0
    %165 = vmatpush1.msra.mxu0 0.0
    %166 = vmatprep.subr.mxu0 0.0
    %167 = vmatpush1.msra.mxu0 0.0
    %168 = vmatprep.subr.mxu0 0.0
    %169 = vmatpush1.msra.mxu0 0.0
    %170 = vmatprep.subr.mxu0 0.0
    %171 = vmatpush1.msra.mxu0 0.0
    %172 = vmatprep.subr.mxu0 0.0
    %173 = vmatpush1.msra.mxu0 0.0
    %174 = vmatprep.subr.mxu0 0.0
    %175 = vmatpush1.msra.mxu0 0.0
    %176 = vmatprep.subr.mxu0 0.0
    %177 = vmatpush1.msra.mxu0 0.0
    %178 = vmatprep.subr.mxu0 0.0
    %179 = vmatpush1.msra.mxu0 0.0
    %180 = vmatprep.subr.mxu0 0.0
    %181 = vmatpush1.msra.mxu0 0.0
    %182 = vmatprep.subr.mxu0 0.0
    %183 = vmatpush1.msra.mxu0 0.0
    %184 = vmatprep.subr.mxu0 0.0
    %185 = vmatpush1.msra.mxu0 0.0
    %186 = vmatprep.subr.mxu0 0.0
    %187 = vmatpush1.msra.mxu0 0.0
    %188 = vmatprep.subr.mxu0 0.0
    %189 = vmatpush1.msra.mxu0 0.0
    %190 = vmatprep.subr.mxu0 0.0
    %191 = vmatpush1.msra.mxu0 0.0
    %192 = vmatprep.subr.mxu0 0.0
    %193 = vmatpush1.msra.mxu0 0.0
    %194 = vmatprep.subr.mxu0 0.0
    %195 = vmatpush1.msra.mxu0 0.0
    %196 = vmatprep.subr.mxu0 0.0
    %197 = vmatpush1.msra.mxu0 0.0
    %198 = vmatprep.subr.mxu0 0.0
    %199 = vmatpush1.msra.mxu0 0.0
    %200 = vmatprep.subr.mxu0 0.0
    %201 = vmatpush1.msra.mxu0 0.0
    %202 = vmatprep.subr.mxu0 0.0
    %203 = vmatpush1.msra.mxu0 0.0
    %204 = vmatprep.subr.mxu0 0.0
    %205 = vmatpush1.msra.mxu0 0.0
    %206 = vmatprep.subr.mxu0 0.0
    %207 = vmatpush1.msra.mxu0 0.0
    %208 = vmatprep.subr.mxu0 0.0
    %209 = vmatpush1.msra.mxu0 0.0
    %210 = vmatprep.mubr.f32.mxu0 0.0
    %211 = vmatmul.mubr.f32.gmra.mrb[0].mxu0 %v144
    %v212 = vpop.f32.mrb[0].mxu0
    %v213 = vadd.f32 0.0, %v212
    %v214 = vpop.f32.mrb[0].mxu0
    %215 = vdwg.mxu0
    %v216 = vadd.f32 %v134, %v213
    %v217 = vxor.u32 %v216, 2147483648
    %v218 = vmul.f32 %v217, 1.442695
    %v219 = vpow.pop %v218
    %v220 = vadd.f32 %v219, 1.0
    %v221 = vrcp.pop %v220
    %v222 = vmul.f32 1.0, %v221
    %v223 = vtanh.pop %v216
    %v224 = vsel %vm51, %v223, %v222
    %v225 = vmul.f32 %v224, 0.0
    %227 = vrot.lane.b32.xlu0 %v224, 64
    %v228 = vpop.permute.xlu0 %227
    %v230 = vmul.f32 %v224, %v228
    %232 = vrot.lane.b32.xlu0 %v230, 32
    %v233 = vpop.permute.xlu0 %232
    %v235 = vadd.f32 %v225, %v233
    %v236 = vtanh.pop %v235
    %238 = vrot.lane.b32.xlu0 %v236, 64
    %v239 = vpop.permute.xlu0 %238
    %v241 = vmul.f32 %v224, %v239
    %243 = vrot.lane.b32.xlu0 %v241, 32
    %v244 = vpop.permute.xlu0 %243
    %v245 = vsel %vm142, %v244, 0
    %247 = vmatprep.subr.mxu0 0.0
    %248 = vmatpush1.msra.mxu0 %v28
    %249 = vmatprep.subr.mxu0 0.0
    %250 = vmatpush1.msra.mxu0 %v29
    %251 = vmatprep.subr.mxu0 0.0
    %252 = vmatpush1.msra.mxu0 %v30
    %253 = vmatprep.subr.mxu0 0.0
    %254 = vmatpush1.msra.mxu0 %v31
    %255 = vmatprep.subr.mxu0 0.0
    %256 = vmatpush1.msra.mxu0 0.0
    %257 = vmatprep.subr.mxu0 0.0
    %258 = vmatpush1.msra.mxu0 0.0
    %259 = vmatprep.subr.mxu0 0.0
    %260 = vmatpush1.msra.mxu0 0.0
    %261 = vmatprep.subr.mxu0 0.0
    %262 = vmatpush1.msra.mxu0 0.0
    %263 = vmatprep.subr.mxu0 0.0
    %264 = vmatpush1.msra.mxu0 0.0
    %265 = vmatprep.subr.mxu0 0.0
    %266 = vmatpush1.msra.mxu0 0.0
    %267 = vmatprep.subr.mxu0 0.0
    %268 = vmatpush1.msra.mxu0 0.0
    %269 = vmatprep.subr.mxu0 0.0
    %270 = vmatpush1.msra.mxu0 0.0
    %271 = vmatprep.subr.mxu0 0.0
    %272 = vmatpush1.msra.mxu0 0.0
    %273 = vmatprep.subr.mxu0 0.0
    %274 = vmatpush1.msra.mxu0 0.0
    %275 = vmatprep.subr.mxu0 0.0
    %276 = vmatpush1.msra.mxu0 0.0
    %277 = vmatprep.subr.mxu0 0.0
    %278 = vmatpush1.msra.mxu0 0.0
    %279 = vmatprep.subr.mxu0 0.0
    %280 = vmatpush1.msra.mxu0 0.0
    %281 = vmatprep.subr.mxu0 0.0
    %282 = vmatpush1.msra.mxu0 0.0
    %283 = vmatprep.subr.mxu0 0.0
    %284 = vmatpush1.msra.mxu0 0.0
    %285 = vmatprep.subr.mxu0 0.0
    %286 = vmatpush1.msra.mxu0 0.0
    %287 = vmatprep.subr.mxu0 0.0
    %288 = vmatpush1.msra.mxu0 0.0
    %289 = vmatprep.subr.mxu0 0.0
    %290 = vmatpush1.msra.mxu0 0.0
    %291 = vmatprep.subr.mxu0 0.0
    %292 = vmatpush1.msra.mxu0 0.0
    %293 = vmatprep.subr.mxu0 0.0
    %294 = vmatpush1.msra.mxu0 0.0
    %295 = vmatprep.subr.mxu0 0.0
    %296 = vmatpush1.msra.mxu0 0.0
    %297 = vmatprep.subr.mxu0 0.0
    %298 = vmatpush1.msra.mxu0 0.0
    %299 = vmatprep.subr.mxu0 0.0
    %300 = vmatpush1.msra.mxu0 0.0
    %301 = vmatprep.subr.mxu0 0.0
    %302 = vmatpush1.msra.mxu0 0.0
    %303 = vmatprep.subr.mxu0 0.0
    %304 = vmatpush1.msra.mxu0 0.0
    %305 = vmatprep.subr.mxu0 0.0
    %306 = vmatpush1.msra.mxu0 0.0
    %307 = vmatprep.subr.mxu0 0.0
    %308 = vmatpush1.msra.mxu0 0.0
    %309 = vmatprep.subr.mxu0 0.0
    %310 = vmatpush1.msra.mxu0 0.0
    %311 = vmatprep.mubr.f32.mxu0 0.0
    %312 = vmatmul.mubr.f32.gmra.mrb[0].mxu0 %v245
    %v313 = vpop.f32.mrb[0].mxu0
    %v314 = vadd.f32 0.0, %v313
    %v315 = vpop.f32.mrb[0].mxu0
    %316 = vdwg.mxu0
    %v318 = vrot.slane %v314, 6
    %v320 = vadd.f32 %v134, %v318
    %v321 = vxor.u32 %v320, 2147483648
    %v322 = vmul.f32 %v321, 1.442695
    %v323 = vpow.pop %v322
    %v324 = vadd.f32 %v323, 1.0
    %v325 = vrcp.pop %v324
    %v326 = vmul.f32 1.0, %v325
    %v327 = vtanh.pop %v320
    %v328 = vsel %vm51, %v327, %v326
    %v330 = vrot.slane %v235, 6
    %v332 = vmul.f32 %v328, %v330
    %334 = vrot.lane.b32.xlu0 %v328, 64
    %v335 = vpop.permute.xlu0 %334
    %v337 = vmul.f32 %v328, %v335
    %339 = vrot.lane.b32.xlu0 %v337, 32
    %v340 = vpop.permute.xlu0 %339
    %v342 = vadd.f32 %v332, %v340
    %v343 = vtanh.pop %v342
    %345 = vrot.lane.b32.xlu0 %v343, 64
    %v346 = vpop.permute.xlu0 %345
    %v348 = vmul.f32 %v328, %v346
    %v350 = vrot.slane %v348, 2
    %351 = vrot.lane.b32.xlu0 %v350, 32
    %v352 = vpop.permute.xlu0 %351
    %v353 = vsel %vm142, %v352, 0
    %355 = vmatprep.subr.mxu0 0.0
    %356 = vmatpush1.msra.mxu0 %v28
    %357 = vmatprep.subr.mxu0 0.0
    %358 = vmatpush1.msra.mxu0 %v29
    %359 = vmatprep.subr.mxu0 0.0
    %360 = vmatpush1.msra.mxu0 %v30
    %361 = vmatprep.subr.mxu0 0.0
    %362 = vmatpush1.msra.mxu0 %v31
    %363 = vmatprep.subr.mxu0 0.0
    %364 = vmatpush1.msra.mxu0 0.0
    %365 = vmatprep.subr.mxu0 0.0
    %366 = vmatpush1.msra.mxu0 0.0
    %367 = vmatprep.subr.mxu0 0.0
    %368 = vmatpush1.msra.mxu0 0.0
    %369 = vmatprep.subr.mxu0 0.0
    %370 = vmatpush1.msra.mxu0 0.0
    %371 = vmatprep.subr.mxu0 0.0
    %372 = vmatpush1.msra.mxu0 0.0
    %373 = vmatprep.subr.mxu0 0.0
    %374 = vmatpush1.msra.mxu0 0.0
    %375 = vmatprep.subr.mxu0 0.0
    %376 = vmatpush1.msra.mxu0 0.0
    %377 = vmatprep.subr.mxu0 0.0
    %378 = vmatpush1.msra.mxu0 0.0
    %379 = vmatprep.subr.mxu0 0.0
    %380 = vmatpush1.msra.mxu0 0.0
    %381 = vmatprep.subr.mxu0 0.0
    %382 = vmatpush1.msra.mxu0 0.0
    %383 = vmatprep.subr.mxu0 0.0
    %384 = vmatpush1.msra.mxu0 0.0
    %385 = vmatprep.subr.mxu0 0.0
    %386 = vmatpush1.msra.mxu0 0.0
    %387 = vmatprep.subr.mxu0 0.0
    %388 = vmatpush1.msra.mxu0 0.0
    %389 = vmatprep.subr.mxu0 0.0
    %390 = vmatpush1.msra.mxu0 0.0
    %391 = vmatprep.subr.mxu0 0.0
    %392 = vmatpush1.msra.mxu0 0.0
    %393 = vmatprep.subr.mxu0 0.0
    %394 = vmatpush1.msra.mxu0 0.0
    %395 = vmatprep.subr.mxu0 0.0
    %396 = vmatpush1.msra.mxu0 0.0
    %397 = vmatprep.subr.mxu0 0.0
    %398 = vmatpush1.msra.mxu0 0.0
    %399 = vmatprep.subr.mxu0 0.0
    %400 = vmatpush1.msra.mxu0 0.0
    %401 = vmatprep.subr.mxu0 0.0
    %402 = vmatpush1.msra.mxu0 0.0
    %403 = vmatprep.subr.mxu0 0.0
    %404 = vmatpush1.msra.mxu0 0.0
    %405 = vmatprep.subr.mxu0 0.0
    %406 = vmatpush1.msra.mxu0 0.0
    %407 = vmatprep.subr.mxu0 0.0
    %408 = vmatpush1.msra.mxu0 0.0
    %409 = vmatprep.subr.mxu0 0.0
    %410 = vmatpush1.msra.mxu0 0.0
    %411 = vmatprep.subr.mxu0 0.0
    %412 = vmatpush1.msra.mxu0 0.0
    %413 = vmatprep.subr.mxu0 0.0
    %414 = vmatpush1.msra.mxu0 0.0
    %415 = vmatprep.subr.mxu0 0.0
    %416 = vmatpush1.msra.mxu0 0.0
    %417 = vmatprep.subr.mxu0 0.0
    %418 = vmatpush1.msra.mxu0 0.0
    %419 = vmatprep.mubr.f32.mxu0 0.0
    %420 = vmatmul.mubr.f32.gmra.mrb[0].mxu0 %v353
    %v421 = vpop.f32.mrb[0].mxu0
    %v422 = vadd.f32 0.0, %v421
    %v423 = vpop.f32.mrb[0].mxu0
    %424 = vdwg.mxu0
    %v426 = vrot.slane %v422, 4
    %v428 = vadd.f32 %v134, %v426
    %v429 = vxor.u32 %v428, 2147483648
    %v430 = vmul.f32 %v429, 1.442695
    %v431 = vpow.pop %v430
    %v432 = vadd.f32 %v431, 1.0
    %v433 = vrcp.pop %v432
    %v434 = vmul.f32 1.0, %v433
    %v435 = vtanh.pop %v428
    %v436 = vsel %vm51, %v435, %v434
    %v438 = vrot.slane %v342, 6
    %v440 = vmul.f32 %v436, %v438
    %442 = vrot.lane.b32.xlu0 %v436, 64
    %v443 = vpop.permute.xlu0 %442
    %v445 = vmul.f32 %v436, %v443
    %447 = vrot.lane.b32.xlu0 %v445, 32
    %v448 = vpop.permute.xlu0 %447
    %v450 = vadd.f32 %v440, %v448
    %v451 = vtanh.pop %v450
    %453 = vrot.lane.b32.xlu0 %v451, 64
    %v454 = vpop.permute.xlu0 %453
    %v456 = vmul.f32 %v436, %v454
    %v458 = vrot.slane %v456, 4
    %459 = vrot.lane.b32.xlu0 %v458, 32
    %v460 = vpop.permute.xlu0 %459
    %v461 = vsel %vm142, %v460, 0
    %463 = vmatprep.subr.mxu0 0.0
    %464 = vmatpush1.msra.mxu0 %v28
    %465 = vmatprep.subr.mxu0 0.0
    %466 = vmatpush1.msra.mxu0 %v29
    %467 = vmatprep.subr.mxu0 0.0
    %468 = vmatpush1.msra.mxu0 %v30
    %469 = vmatprep.subr.mxu0 0.0
    %470 = vmatpush1.msra.mxu0 %v31
    %471 = vmatprep.subr.mxu0 0.0
    %472 = vmatpush1.msra.mxu0 0.0
    %473 = vmatprep.subr.mxu0 0.0
    %474 = vmatpush1.msra.mxu0 0.0
    %475 = vmatprep.subr.mxu0 0.0
    %476 = vmatpush1.msra.mxu0 0.0
    %477 = vmatprep.subr.mxu0 0.0
    %478 = vmatpush1.msra.mxu0 0.0
    %479 = vmatprep.subr.mxu0 0.0
    %480 = vmatpush1.msra.mxu0 0.0
    %481 = vmatprep.subr.mxu0 0.0
    %482 = vmatpush1.msra.mxu0 0.0
    %483 = vmatprep.subr.mxu0 0.0
    %484 = vmatpush1.msra.mxu0 0.0
    %485 = vmatprep.subr.mxu0 0.0
    %486 = vmatpush1.msra.mxu0 0.0
    %487 = vmatprep.subr.mxu0 0.0
    %488 = vmatpush1.msra.mxu0 0.0
    %489 = vmatprep.subr.mxu0 0.0
    %490 = vmatpush1.msra.mxu0 0.0
    %491 = vmatprep.subr.mxu0 0.0
    %492 = vmatpush1.msra.mxu0 0.0
    %493 = vmatprep.subr.mxu0 0.0
    %494 = vmatpush1.msra.mxu0 0.0
    %495 = vmatprep.subr.mxu0 0.0
    %496 = vmatpush1.msra.mxu0 0.0
    %497 = vmatprep.subr.mxu0 0.0
    %498 = vmatpush1.msra.mxu0 0.0
    %499 = vmatprep.subr.mxu0 0.0
    %500 = vmatpush1.msra.mxu0 0.0
    %501 = vmatprep.subr.mxu0 0.0
    %502 = vmatpush1.msra.mxu0 0.0
    %503 = vmatprep.subr.mxu0 0.0
    %504 = vmatpush1.msra.mxu0 0.0
    %505 = vmatprep.subr.mxu0 0.0
    %506 = vmatpush1.msra.mxu0 0.0
    %507 = vmatprep.subr.mxu0 0.0
    %508 = vmatpush1.msra.mxu0 0.0
    %509 = vmatprep.subr.mxu0 0.0
    %510 = vmatpush1.msra.mxu0 0.0
    %511 = vmatprep.subr.mxu0 0.0
    %512 = vmatpush1.msra.mxu0 0.0
    %513 = vmatprep.subr.mxu0 0.0
    %514 = vmatpush1.msra.mxu0 0.0
    %515 = vmatprep.subr.mxu0 0.0
    %516 = vmatpush1.msra.mxu0 0.0
    %517 = vmatprep.subr.mxu0 0.0
    %518 = vmatpush1.msra.mxu0 0.0
    %519 = vmatprep.subr.mxu0 0.0
    %520 = vmatpush1.msra.mxu0 0.0
    %521 = vmatprep.subr.mxu0 0.0
    %522 = vmatpush1.msra.mxu0 0.0
    %523 = vmatprep.subr.mxu0 0.0
    %524 = vmatpush1.msra.mxu0 0.0
    %525 = vmatprep.subr.mxu0 0.0
    %526 = vmatpush1.msra.mxu0 0.0
    %527 = vmatprep.mubr.f32.mxu0 0.0
    %528 = vmatmul.mubr.f32.gmra.mrb[0].mxu0 %v461
    %v529 = vpop.f32.mrb[0].mxu0
    %v530 = vadd.f32 0.0, %v529
    %v531 = vpop.f32.mrb[0].mxu0
    %532 = vdwg.mxu0
    %v534 = vrot.slane %v530, 2
    %v536 = vadd.f32 %v134, %v534
    %v537 = vxor.u32 %v536, 2147483648
    %v538 = vmul.f32 %v537, 1.442695
    %v539 = vpow.pop %v538
    %v540 = vadd.f32 %v539, 1.0
    %v541 = vrcp.pop %v540
    %v542 = vmul.f32 1.0, %v541
    %v543 = vtanh.pop %v536
    %v544 = vsel %vm51, %v543, %v542
    %v546 = vrot.slane %v450, 6
    %v548 = vmul.f32 %v544, %v546
    %550 = vrot.lane.b32.xlu0 %v544, 64
    %v551 = vpop.permute.xlu0 %550
    %v553 = vmul.f32 %v544, %v551
    %555 = vrot.lane.b32.xlu0 %v553, 32
    %v556 = vpop.permute.xlu0 %555
    %v558 = vadd.f32 %v548, %v556
    %v559 = vtanh.pop %v558
    %561 = vrot.lane.b32.xlu0 %v559, 64
    %v562 = vpop.permute.xlu0 %561
    %v564 = vmul.f32 %v544, %v562
    %v566 = vrot.slane %v564, 6
    %567 = vrot.lane.b32.xlu0 %v566, 32
    %v568 = vpop.permute.xlu0 %567
    %v569 = vsel %vm142, %v568, 0
    %571 = vmatprep.subr.mxu0 0.0
    %572 = vmatpush1.msra.mxu0 %v28
    %573 = vmatprep.subr.mxu0 0.0
    %574 = vmatpush1.msra.mxu0 %v29
    %575 = vmatprep.subr.mxu0 0.0
    %576 = vmatpush1.msra.mxu0 %v30
    %577 = vmatprep.subr.mxu0 0.0
    %578 = vmatpush1.msra.mxu0 %v31
    %579 = vmatprep.subr.mxu0 0.0
    %580 = vmatpush1.msra.mxu0 0.0
    %581 = vmatprep.subr.mxu0 0.0
    %582 = vmatpush1.msra.mxu0 0.0
    %583 = vmatprep.subr.mxu0 0.0
    %584 = vmatpush1.msra.mxu0 0.0
    %585 = vmatprep.subr.mxu0 0.0
    %586 = vmatpush1.msra.mxu0 0.0
    %587 = vmatprep.subr.mxu0 0.0
    %588 = vmatpush1.msra.mxu0 0.0
    %589 = vmatprep.subr.mxu0 0.0
    %590 = vmatpush1.msra.mxu0 0.0
    %591 = vmatprep.subr.mxu0 0.0
    %592 = vmatpush1.msra.mxu0 0.0
    %593 = vmatprep.subr.mxu0 0.0
    %594 = vmatpush1.msra.mxu0 0.0
    %595 = vmatprep.subr.mxu0 0.0
    %596 = vmatpush1.msra.mxu0 0.0
    %597 = vmatprep.subr.mxu0 0.0
    %598 = vmatpush1.msra.mxu0 0.0
    %599 = vmatprep.subr.mxu0 0.0
    %600 = vmatpush1.msra.mxu0 0.0
    %601 = vmatprep.subr.mxu0 0.0
    %602 = vmatpush1.msra.mxu0 0.0
    %603 = vmatprep.subr.mxu0 0.0
    %604 = vmatpush1.msra.mxu0 0.0
    %605 = vmatprep.subr.mxu0 0.0
    %606 = vmatpush1.msra.mxu0 0.0
    %607 = vmatprep.subr.mxu0 0.0
    %608 = vmatpush1.msra.mxu0 0.0
    %609 = vmatprep.subr.mxu0 0.0
    %610 = vmatpush1.msra.mxu0 0.0
    %611 = vmatprep.subr.mxu0 0.0
    %612 = vmatpush1.msra.mxu0 0.0
    %613 = vmatprep.subr.mxu0 0.0
    %614 = vmatpush1.msra.mxu0 0.0
    %615 = vmatprep.subr.mxu0 0.0
    %616 = vmatpush1.msra.mxu0 0.0
    %617 = vmatprep.subr.mxu0 0.0
    %618 = vmatpush1.msra.mxu0 0.0
    %619 = vmatprep.subr.mxu0 0.0
    %620 = vmatpush1.msra.mxu0 0.0
    %621 = vmatprep.subr.mxu0 0.0
    %622 = vmatpush1.msra.mxu0 0.0
    %623 = vmatprep.subr.mxu0 0.0
    %624 = vmatpush1.msra.mxu0 0.0
    %625 = vmatprep.subr.mxu0 0.0
    %626 = vmatpush1.msra.mxu0 0.0
    %627 = vmatprep.subr.mxu0 0.0
    %628 = vmatpush1.msra.mxu0 0.0
    %629 = vmatprep.subr.mxu0 0.0
    %630 = vmatpush1.msra.mxu0 0.0
    %631 = vmatprep.subr.mxu0 0.0
    %632 = vmatpush1.msra.mxu0 0.0
    %633 = vmatprep.subr.mxu0 0.0
    %634 = vmatpush1.msra.mxu0 0.0
    %635 = vmatprep.mubr.f32.mxu0 0.0
    %636 = vmatmul.mubr.f32.gmra.mrb[0].mxu0 %v569
    %v637 = vpop.f32.mrb[0].mxu0
    %v638 = vadd.f32 0.0, %v637
    %v639 = vpop.f32.mrb[0].mxu0
    %640 = vdwg.mxu0
    %v641 = vadd.f32 %v139, %v638
    %v642 = vxor.u32 %v641, 2147483648
    %v643 = vmul.f32 %v642, 1.442695
    %v644 = vpow.pop %v643
    %v645 = vadd.f32 %v644, 1.0
    %v646 = vrcp.pop %v645
    %v647 = vmul.f32 1.0, %v646
    %v648 = vtanh.pop %v641
    %v649 = vsel %vm51, %v648, %v647
    %v651 = vrot.slane %v558, 6
    %v653 = vmul.f32 %v649, %v651
    %655 = vrot.lane.b32.xlu0 %v649, 64
    %v656 = vpop.permute.xlu0 %655
    %v658 = vmul.f32 %v649, %v656
    %660 = vrot.lane.b32.xlu0 %v658, 32
    %v661 = vpop.permute.xlu0 %660
    %v663 = vadd.f32 %v653, %v661
    %v664 = vtanh.pop %v663
    %666 = vrot.lane.b32.xlu0 %v664, 64
    %v667 = vpop.permute.xlu0 %666
    %v669 = vmul.f32 %v649, %v667
    %671 = vrot.lane.b32.xlu0 %v669, 32
    %v672 = vpop.permute.xlu0 %671
    %v673 = vsel %vm142, %v672, 0
    %675 = vmatprep.subr.mxu0 0.0
    %676 = vmatpush1.msra.mxu0 %v28
    %677 = vmatprep.subr.mxu0 0.0
    %678 = vmatpush1.msra.mxu0 %v29
    %679 = vmatprep.subr.mxu0 0.0
    %680 = vmatpush1.msra.mxu0 %v30
    %681 = vmatprep.subr.mxu0 0.0
    %682 = vmatpush1.msra.mxu0 %v31
    %683 = vmatprep.subr.mxu0 0.0
    %684 = vmatpush1.msra.mxu0 0.0
    %685 = vmatprep.subr.mxu0 0.0
    %686 = vmatpush1.msra.mxu0 0.0
    %687 = vmatprep.subr.mxu0 0.0
    %688 = vmatpush1.msra.mxu0 0.0
    %689 = vmatprep.subr.mxu0 0.0
    %690 = vmatpush1.msra.mxu0 0.0
    %691 = vmatprep.subr.mxu0 0.0
    %692 = vmatpush1.msra.mxu0 0.0
    %693 = vmatprep.subr.mxu0 0.0
    %694 = vmatpush1.msra.mxu0 0.0
    %695 = vmatprep.subr.mxu0 0.0
    %696 = vmatpush1.msra.mxu0 0.0
    %697 = vmatprep.subr.mxu0 0.0
    %698 = vmatpush1.msra.mxu0 0.0
    %699 = vmatprep.subr.mxu0 0.0
    %700 = vmatpush1.msra.mxu0 0.0
    %701 = vmatprep.subr.mxu0 0.0
    %702 = vmatpush1.msra.mxu0 0.0
    %703 = vmatprep.subr.mxu0 0.0
    %704 = vmatpush1.msra.mxu0 0.0
    %705 = vmatprep.subr.mxu0 0.0
    %706 = vmatpush1.msra.mxu0 0.0
    %707 = vmatprep.subr.mxu0 0.0
    %708 = vmatpush1.msra.mxu0 0.0
    %709 = vmatprep.subr.mxu0 0.0
    %710 = vmatpush1.msra.mxu0 0.0
    %711 = vmatprep.subr.mxu0 0.0
    %712 = vmatpush1.msra.mxu0 0.0
    %713 = vmatprep.subr.mxu0 0.0
    %714 = vmatpush1.msra.mxu0 0.0
    %715 = vmatprep.subr.mxu0 0.0
    %716 = vmatpush1.msra.mxu0 0.0
    %717 = vmatprep.subr.mxu0 0.0
    %718 = vmatpush1.msra.mxu0 0.0
    %719 = vmatprep.subr.mxu0 0.0
    %720 = vmatpush1.msra.mxu0 0.0
    %721 = vmatprep.subr.mxu0 0.0
    %722 = vmatpush1.msra.mxu0 0.0
    %723 = vmatprep.subr.mxu0 0.0
    %724 = vmatpush1.msra.mxu0 0.0
    %725 = vmatprep.subr.mxu0 0.0
    %726 = vmatpush1.msra.mxu0 0.0
    %727 = vmatprep.subr.mxu0 0.0
    %728 = vmatpush1.msra.mxu0 0.0
    %729 = vmatprep.subr.mxu0 0.0
    %730 = vmatpush1.msra.mxu0 0.0
    %731 = vmatprep.subr.mxu0 0.0
    %732 = vmatpush1.msra.mxu0 0.0
    %733 = vmatprep.subr.mxu0 0.0
    %734 = vmatpush1.msra.mxu0 0.0
    %735 = vmatprep.subr.mxu0 0.0
    %736 = vmatpush1.msra.mxu0 0.0
    %737 = vmatprep.subr.mxu0 0.0
    %738 = vmatpush1.msra.mxu0 0.0
    %739 = vmatprep.mubr.f32.mxu0 0.0
    %740 = vmatmul.mubr.f32.gmra.mrb[0].mxu0 %v673
    %v741 = vpop.f32.mrb[0].mxu0
    %v742 = vadd.f32 0.0, %v741
    %v743 = vpop.f32.mrb[0].mxu0
    %744 = vdwg.mxu0
    %v746 = vrot.slane %v742, 6
    %v748 = vadd.f32 %v139, %v746
    %v749 = vxor.u32 %v748, 2147483648
    %v750 = vmul.f32 %v749, 1.442695
    %v751 = vpow.pop %v750
    %v752 = vadd.f32 %v751, 1.0
    %v753 = vrcp.pop %v752
    %v754 = vmul.f32 1.0, %v753
    %v755 = vtanh.pop %v748
    %v756 = vsel %vm51, %v755, %v754
    %v758 = vrot.slane %v663, 6
    %v760 = vmul.f32 %v756, %v758
    %762 = vrot.lane.b32.xlu0 %v756, 64
    %v763 = vpop.permute.xlu0 %762
    %v765 = vmul.f32 %v756, %v763
    %767 = vrot.lane.b32.xlu0 %v765, 32
    %v768 = vpop.permute.xlu0 %767
    %v770 = vadd.f32 %v760, %v768
    %v771 = vtanh.pop %v770
    %773 = vrot.lane.b32.xlu0 %v771, 64
    %v774 = vpop.permute.xlu0 %773
    %v776 = vmul.f32 %v756, %v774
    %v778 = vrot.slane %v776, 2
    %779 = vrot.lane.b32.xlu0 %v778, 32
    %v780 = vpop.permute.xlu0 %779
    %v781 = vsel %vm142, %v780, 0
    %783 = vmatprep.subr.mxu0 0.0
    %784 = vmatpush1.msra.mxu0 %v28
    %785 = vmatprep.subr.mxu0 0.0
    %786 = vmatpush1.msra.mxu0 %v29
    %787 = vmatprep.subr.mxu0 0.0
    %788 = vmatpush1.msra.mxu0 %v30
    %789 = vmatprep.subr.mxu0 0.0
    %790 = vmatpush1.msra.mxu0 %v31
    %791 = vmatprep.subr.mxu0 0.0
    %792 = vmatpush1.msra.mxu0 0.0
    %793 = vmatprep.subr.mxu0 0.0
    %794 = vmatpush1.msra.mxu0 0.0
    %795 = vmatprep.subr.mxu0 0.0
    %796 = vmatpush1.msra.mxu0 0.0
    %797 = vmatprep.subr.mxu0 0.0
    %798 = vmatpush1.msra.mxu0 0.0
    %799 = vmatprep.subr.mxu0 0.0
    %800 = vmatpush1.msra.mxu0 0.0
    %801 = vmatprep.subr.mxu0 0.0
    %802 = vmatpush1.msra.mxu0 0.0
    %803 = vmatprep.subr.mxu0 0.0
    %804 = vmatpush1.msra.mxu0 0.0
    %805 = vmatprep.subr.mxu0 0.0
    %806 = vmatpush1.msra.mxu0 0.0
    %807 = vmatprep.subr.mxu0 0.0
    %808 = vmatpush1.msra.mxu0 0.0
    %809 = vmatprep.subr.mxu0 0.0
    %810 = vmatpush1.msra.mxu0 0.0
    %811 = vmatprep.subr.mxu0 0.0
    %812 = vmatpush1.msra.mxu0 0.0
    %813 = vmatprep.subr.mxu0 0.0
    %814 = vmatpush1.msra.mxu0 0.0
    %815 = vmatprep.subr.mxu0 0.0
    %816 = vmatpush1.msra.mxu0 0.0
    %817 = vmatprep.subr.mxu0 0.0
    %818 = vmatpush1.msra.mxu0 0.0
    %819 = vmatprep.subr.mxu0 0.0
    %820 = vmatpush1.msra.mxu0 0.0
    %821 = vmatprep.subr.mxu0 0.0
    %822 = vmatpush1.msra.mxu0 0.0
    %823 = vmatprep.subr.mxu0 0.0
    %824 = vmatpush1.msra.mxu0 0.0
    %825 = vmatprep.subr.mxu0 0.0
    %826 = vmatpush1.msra.mxu0 0.0
    %827 = vmatprep.subr.mxu0 0.0
    %828 = vmatpush1.msra.mxu0 0.0
    %829 = vmatprep.subr.mxu0 0.0
    %830 = vmatpush1.msra.mxu0 0.0
    %831 = vmatprep.subr.mxu0 0.0
    %832 = vmatpush1.msra.mxu0 0.0
    %833 = vmatprep.subr.mxu0 0.0
    %834 = vmatpush1.msra.mxu0 0.0
    %835 = vmatprep.subr.mxu0 0.0
    %836 = vmatpush1.msra.mxu0 0.0
    %837 = vmatprep.subr.mxu0 0.0
    %838 = vmatpush1.msra.mxu0 0.0
    %839 = vmatprep.subr.mxu0 0.0
    %840 = vmatpush1.msra.mxu0 0.0
    %841 = vmatprep.subr.mxu0 0.0
    %842 = vmatpush1.msra.mxu0 0.0
    %843 = vmatprep.subr.mxu0 0.0
    %844 = vmatpush1.msra.mxu0 0.0
    %845 = vmatprep.subr.mxu0 0.0
    %846 = vmatpush1.msra.mxu0 0.0
    %847 = vmatprep.mubr.f32.mxu0 0.0
    %848 = vmatmul.mubr.f32.gmra.mrb[0].mxu0 %v781
    %v849 = vpop.f32.mrb[0].mxu0
    %v850 = vadd.f32 0.0, %v849
    %v851 = vpop.f32.mrb[0].mxu0
    %852 = vdwg.mxu0
    %v854 = vrot.slane %v850, 4
    %v856 = vadd.f32 %v139, %v854
    %v857 = vxor.u32 %v856, 2147483648
    %v858 = vmul.f32 %v857, 1.442695
    %v859 = vpow.pop %v858
    %v860 = vadd.f32 %v859, 1.0
    %v861 = vrcp.pop %v860
    %v862 = vmul.f32 1.0, %v861
    %v863 = vtanh.pop %v856
    %v864 = vsel %vm51, %v863, %v862
    %v866 = vrot.slane %v770, 6
    %v868 = vmul.f32 %v864, %v866
    %870 = vrot.lane.b32.xlu0 %v864, 64
    %v871 = vpop.permute.xlu0 %870
    %v873 = vmul.f32 %v864, %v871
    %875 = vrot.lane.b32.xlu0 %v873, 32
    %v876 = vpop.permute.xlu0 %875
    %v878 = vadd.f32 %v868, %v876
    %v879 = vtanh.pop %v878
    %881 = vrot.lane.b32.xlu0 %v879, 64
    %v882 = vpop.permute.xlu0 %881
    %v884 = vmul.f32 %v864, %v882
    %v886 = vrot.slane %v884, 4
    %887 = vrot.lane.b32.xlu0 %v886, 32
    %v888 = vpop.permute.xlu0 %887
    %v889 = vsel %vm142, %v888, 0
    %891 = vmatprep.subr.mxu0 0.0
    %892 = vmatpush1.msra.mxu0 %v28
    %893 = vmatprep.subr.mxu0 0.0
    %894 = vmatpush1.msra.mxu0 %v29
    %895 = vmatprep.subr.mxu0 0.0
    %896 = vmatpush1.msra.mxu0 %v30
    %897 = vmatprep.subr.mxu0 0.0
    %898 = vmatpush1.msra.mxu0 %v31
    %899 = vmatprep.subr.mxu0 0.0
    %900 = vmatpush1.msra.mxu0 0.0
    %901 = vmatprep.subr.mxu0 0.0
    %902 = vmatpush1.msra.mxu0 0.0
    %903 = vmatprep.subr.mxu0 0.0
    %904 = vmatpush1.msra.mxu0 0.0
    %905 = vmatprep.subr.mxu0 0.0
    %906 = vmatpush1.msra.mxu0 0.0
    %907 = vmatprep.subr.mxu0 0.0
    %908 = vmatpush1.msra.mxu0 0.0
    %909 = vmatprep.subr.mxu0 0.0
    %910 = vmatpush1.msra.mxu0 0.0
    %911 = vmatprep.subr.mxu0 0.0
    %912 = vmatpush1.msra.mxu0 0.0
    %913 = vmatprep.subr.mxu0 0.0
    %914 = vmatpush1.msra.mxu0 0.0
    %915 = vmatprep.subr.mxu0 0.0
    %916 = vmatpush1.msra.mxu0 0.0
    %917 = vmatprep.subr.mxu0 0.0
    %918 = vmatpush1.msra.mxu0 0.0
    %919 = vmatprep.subr.mxu0 0.0
    %920 = vmatpush1.msra.mxu0 0.0
    %921 = vmatprep.subr.mxu0 0.0
    %922 = vmatpush1.msra.mxu0 0.0
    %923 = vmatprep.subr.mxu0 0.0
    %924 = vmatpush1.msra.mxu0 0.0
    %925 = vmatprep.subr.mxu0 0.0
    %926 = vmatpush1.msra.mxu0 0.0
    %927 = vmatprep.subr.mxu0 0.0
    %928 = vmatpush1.msra.mxu0 0.0
    %929 = vmatprep.subr.mxu0 0.0
    %930 = vmatpush1.msra.mxu0 0.0
    %931 = vmatprep.subr.mxu0 0.0
    %932 = vmatpush1.msra.mxu0 0.0
    %933 = vmatprep.subr.mxu0 0.0
    %934 = vmatpush1.msra.mxu0 0.0
    %935 = vmatprep.subr.mxu0 0.0
    %936 = vmatpush1.msra.mxu0 0.0
    %937 = vmatprep.subr.mxu0 0.0
    %938 = vmatpush1.msra.mxu0 0.0
    %939 = vmatprep.subr.mxu0 0.0
    %940 = vmatpush1.msra.mxu0 0.0
    %941 = vmatprep.subr.mxu0 0.0
    %942 = vmatpush1.msra.mxu0 0.0
    %943 = vmatprep.subr.mxu0 0.0
    %944 = vmatpush1.msra.mxu0 0.0
    %945 = vmatprep.subr.mxu0 0.0
    %946 = vmatpush1.msra.mxu0 0.0
    %947 = vmatprep.subr.mxu0 0.0
    %948 = vmatpush1.msra.mxu0 0.0
    %949 = vmatprep.subr.mxu0 0.0
    %950 = vmatpush1.msra.mxu0 0.0
    %951 = vmatprep.subr.mxu0 0.0
    %952 = vmatpush1.msra.mxu0 0.0
    %953 = vmatprep.subr.mxu0 0.0
    %954 = vmatpush1.msra.mxu0 0.0
    %955 = vmatprep.mubr.f32.mxu0 0.0
    %956 = vmatmul.mubr.f32.gmra.mrb[0].mxu0 %v889
    %v957 = vpop.f32.mrb[0].mxu0
    %v958 = vadd.f32 0.0, %v957
    %v959 = vpop.f32.mrb[0].mxu0
    %960 = vdwg.mxu0
    %v962 = vrot.slane %v958, 2
    %v964 = vadd.f32 %v139, %v962
    %v965 = vxor.u32 %v964, 2147483648
    %v966 = vmul.f32 %v965, 1.442695
    %v967 = vpow.pop %v966
    %v968 = vadd.f32 %v967, 1.0
    %v969 = vrcp.pop %v968
    %v970 = vmul.f32 1.0, %v969
    %v971 = vtanh.pop %v964
    %v972 = vsel %vm51, %v971, %v970
    %v974 = vrot.slane %v878, 6
    %v976 = vmul.f32 %v972, %v974
    %978 = vrot.lane.b32.xlu0 %v972, 64
    %v979 = vpop.permute.xlu0 %978
    %v981 = vmul.f32 %v972, %v979
    %983 = vrot.lane.b32.xlu0 %v981, 32
    %v984 = vpop.permute.xlu0 %983
    %v986 = vadd.f32 %v976, %v984
    %v987 = vtanh.pop %v986
    %989 = vrot.lane.b32.xlu0 %v987, 64
    %v990 = vpop.permute.xlu0 %989
    %v992 = vmul.f32 %v972, %v990
    %v993 = vlaneseq
    %v994 = vshrl.u32 %v993, 7
    %v995 = vsub.s32 0, %v994
    %v996 = vrot.slane %v41, %v995
    %v998 = vrot.slane %v992, 6
    %999 = vrot.lane.b32.xlu0 %v998, 32
    %v1000 = vpop.permute.xlu0 %999
    %v1001 = vsel %vm142, %v1000, 0
    %1003 = vmatprep.subr.mxu0 0.0
    %1004 = vmatpush1.msra.mxu0 %v33
    %1005 = vmatprep.subr.mxu0 0.0
    %1006 = vmatpush1.msra.mxu0 %v34
    %1007 = vmatprep.subr.mxu0 0.0
    %1008 = vmatpush1.msra.mxu0 %v35
    %1009 = vmatprep.subr.mxu0 0.0
    %1010 = vmatpush1.msra.mxu0 %v36
    %1011 = vmatprep.subr.mxu0 0.0
    %1012 = vmatpush1.msra.mxu0 0.0
    %1013 = vmatprep.subr.mxu0 0.0
    %1014 = vmatpush1.msra.mxu0 0.0
    %1015 = vmatprep.subr.mxu0 0.0
    %1016 = vmatpush1.msra.mxu0 0.0
    %1017 = vmatprep.subr.mxu0 0.0
    %1018 = vmatpush1.msra.mxu0 0.0
    %1019 = vmatprep.subr.mxu0 0.0
    %1020 = vmatpush1.msra.mxu0 0.0
    %1021 = vmatprep.subr.mxu0 0.0
    %1022 = vmatpush1.msra.mxu0 0.0
    %1023 = vmatprep.subr.mxu0 0.0
    %1024 = vmatpush1.msra.mxu0 0.0
    %1025 = vmatprep.subr.mxu0 0.0
    %1026 = vmatpush1.msra.mxu0 0.0
    %1027 = vmatprep.subr.mxu0 0.0
    %1028 = vmatpush1.msra.mxu0 0.0
    %1029 = vmatprep.subr.mxu0 0.0
    %1030 = vmatpush1.msra.mxu0 0.0
    %1031 = vmatprep.subr.mxu0 0.0
    %1032 = vmatpush1.msra.mxu0 0.0
    %1033 = vmatprep.subr.mxu0 0.0
    %1034 = vmatpush1.msra.mxu0 0.0
    %1035 = vmatprep.subr.mxu0 0.0
    %1036 = vmatpush1.msra.mxu0 0.0
    %1037 = vmatprep.subr.mxu0 0.0
    %1038 = vmatpush1.msra.mxu0 0.0
    %1039 = vmatprep.subr.mxu0 0.0
    %1040 = vmatpush1.msra.mxu0 0.0
    %1041 = vmatprep.subr.mxu0 0.0
    %1042 = vmatpush1.msra.mxu0 0.0
    %1043 = vmatprep.subr.mxu0 0.0
    %1044 = vmatpush1.msra.mxu0 0.0
    %1045 = vmatprep.subr.mxu0 0.0
    %1046 = vmatpush1.msra.mxu0 0.0
    %1047 = vmatprep.subr.mxu0 0.0
    %1048 = vmatpush1.msra.mxu0 0.0
    %1049 = vmatprep.subr.mxu0 0.0
    %1050 = vmatpush1.msra.mxu0 0.0
    %1051 = vmatprep.subr.mxu0 0.0
    %1052 = vmatpush1.msra.mxu0 0.0
    %1053 = vmatprep.subr.mxu0 0.0
    %1054 = vmatpush1.msra.mxu0 0.0
    %1055 = vmatprep.subr.mxu0 0.0
    %1056 = vmatpush1.msra.mxu0 0.0
    %1057 = vmatprep.subr.mxu0 0.0
    %1058 = vmatpush1.msra.mxu0 0.0
    %1059 = vmatprep.subr.mxu0 0.0
    %1060 = vmatpush1.msra.mxu0 0.0
    %1061 = vmatprep.subr.mxu0 0.0
    %1062 = vmatpush1.msra.mxu0 0.0
    %1063 = vmatprep.subr.mxu0 0.0
    %1064 = vmatpush1.msra.mxu0 0.0
    %1065 = vmatprep.subr.mxu0 0.0
    %1066 = vmatpush1.msra.mxu0 0.0
    %1067 = vmatprep.mubr.f32.mxu0 0.0
    %1068 = vmatmul.mubr.f32.gmra.mrb[0].mxu0 %v1001
    %v1069 = vpop.f32.mrb[0].mxu0
    %v1070 = vadd.f32 %v996, %v1069
    %v1071 = vpop.f32.mrb[0].mxu0
    %1072 = vdwg.mxu0
    %1073 = vmatprep.subr.mxu0 0.0
    %1074 = vmatpush1.msra.mxu0 %v37
    %1075 = vmatprep.subr.mxu0 0.0
    %1076 = vmatpush1.msra.mxu0 %v38
    %1077 = vmatprep.subr.mxu0 0.0
    %1078 = vmatpush1.msra.mxu0 %v39
    %1079 = vmatprep.subr.mxu0 0.0
    %1080 = vmatpush1.msra.mxu0 %v40
    %1081 = vmatprep.subr.mxu0 0.0
    %1082 = vmatpush1.msra.mxu0 0.0
    %1083 = vmatprep.subr.mxu0 0.0
    %1084 = vmatpush1.msra.mxu0 0.0
    %1085 = vmatprep.subr.mxu0 0.0
    %1086 = vmatpush1.msra.mxu0 0.0
    %1087 = vmatprep.subr.mxu0 0.0
    %1088 = vmatpush1.msra.mxu0 0.0
    %1089 = vmatprep.subr.mxu0 0.0
    %1090 = vmatpush1.msra.mxu0 0.0
    %1091 = vmatprep.subr.mxu0 0.0
    %1092 = vmatpush1.msra.mxu0 0.0
    %1093 = vmatprep.subr.mxu0 0.0
    %1094 = vmatpush1.msra.mxu0 0.0
    %1095 = vmatprep.subr.mxu0 0.0
    %1096 = vmatpush1.msra.mxu0 0.0
    %1097 = vmatprep.subr.mxu0 0.0
    %1098 = vmatpush1.msra.mxu0 0.0
    %1099 = vmatprep.subr.mxu0 0.0
    %1100 = vmatpush1.msra.mxu0 0.0
    %1101 = vmatprep.subr.mxu0 0.0
    %1102 = vmatpush1.msra.mxu0 0.0
    %1103 = vmatprep.subr.mxu0 0.0
    %1104 = vmatpush1.msra.mxu0 0.0
    %1105 = vmatprep.subr.mxu0 0.0
    %1106 = vmatpush1.msra.mxu0 0.0
    %1107 = vmatprep.subr.mxu0 0.0
    %1108 = vmatpush1.msra.mxu0 0.0
    %1109 = vmatprep.subr.mxu0 0.0
    %1110 = vmatpush1.msra.mxu0 0.0
    %1111 = vmatprep.subr.mxu0 0.0
    %1112 = vmatpush1.msra.mxu0 0.0
    %1113 = vmatprep.subr.mxu0 0.0
    %1114 = vmatpush1.msra.mxu0 0.0
    %1115 = vmatprep.subr.mxu0 0.0
    %1116 = vmatpush1.msra.mxu0 0.0
    %1117 = vmatprep.subr.mxu0 0.0
    %1118 = vmatpush1.msra.mxu0 0.0
    %1119 = vmatprep.subr.mxu0 0.0
    %1120 = vmatpush1.msra.mxu0 0.0
    %1121 = vmatprep.subr.mxu0 0.0
    %1122 = vmatpush1.msra.mxu0 0.0
    %1123 = vmatprep.subr.mxu0 0.0
    %1124 = vmatpush1.msra.mxu0 0.0
    %1125 = vmatprep.subr.mxu0 0.0
    %1126 = vmatpush1.msra.mxu0 0.0
    %1127 = vmatprep.subr.mxu0 0.0
    %1128 = vmatpush1.msra.mxu0 0.0
    %1129 = vmatprep.subr.mxu0 0.0
    %1130 = vmatpush1.msra.mxu0 0.0
    %1131 = vmatprep.subr.mxu0 0.0
    %1132 = vmatpush1.msra.mxu0 0.0
    %1133 = vmatprep.subr.mxu0 0.0
    %1134 = vmatpush1.msra.mxu0 0.0
    %1135 = vmatprep.subr.mxu0 0.0
    %1136 = vmatpush1.msra.mxu0 0.0
    %1137 = vmatprep.mubr.f32.mxu0 0.0
    %1138 = vmatmul.mubr.f32.gmra.mrb[0].mxu0 %v144
    %v1139 = vpop.f32.mrb[0].mxu0
    %v1140 = vadd.f32 0.0, %v1139
    %v1141 = vpop.f32.mrb[0].mxu0
    %1142 = vdwg.mxu0
    %v1143 = vadd.f32 %v1070, %v1140
    %v1144 = vxor.u32 %v1143, 2147483648
    %v1145 = vmul.f32 %v1144, 1.442695
    %v1146 = vpow.pop %v1145
    %v1147 = vadd.f32 %v1146, 1.0
    %v1148 = vrcp.pop %v1147
    %v1149 = vmul.f32 1.0, %v1148
    %v1150 = vtanh.pop %v1143
    %v1151 = vsel %vm51, %v1150, %v1149
    %v1152 = vmul.f32 %v1151, 0.0
    %1154 = vrot.lane.b32.xlu0 %v1151, 64
    %v1155 = vpop.permute.xlu0 %1154
    %v1157 = vmul.f32 %v1151, %v1155
    %1159 = vrot.lane.b32.xlu0 %v1157, 32
    %v1160 = vpop.permute.xlu0 %1159
    %v1162 = vadd.f32 %v1152, %v1160
    %v1163 = vtanh.pop %v1162
    %1165 = vrot.lane.b32.xlu0 %v1163, 64
    %v1166 = vpop.permute.xlu0 %1165
    %v1168 = vmul.f32 %v1151, %v1166
    %1170 = vrot.lane.b32.xlu0 %v1168, 32
    %v1171 = vpop.permute.xlu0 %1170
    %v1172 = vsel %vm142, %v1171, 0
    %1174 = vmatprep.subr.mxu0 0.0
    %1175 = vmatpush1.msra.mxu0 %v37
    %1176 = vmatprep.subr.mxu0 0.0
    %1177 = vmatpush1.msra.mxu0 %v38
    %1178 = vmatprep.subr.mxu0 0.0
    %1179 = vmatpush1.msra.mxu0 %v39
    %1180 = vmatprep.subr.mxu0 0.0
    %1181 = vmatpush1.msra.mxu0 %v40
    %1182 = vmatprep.subr.mxu0 0.0
    %1183 = vmatpush1.msra.mxu0 0.0
    %1184 = vmatprep.subr.mxu0 0.0
    %1185 = vmatpush1.msra.mxu0 0.0
    %1186 = vmatprep.subr.mxu0 0.0
    %1187 = vmatpush1.msra.mxu0 0.0
    %1188 = vmatprep.subr.mxu0 0.0
    %1189 = vmatpush1.msra.mxu0 0.0
    %1190 = vmatprep.subr.mxu0 0.0
    %1191 = vmatpush1.msra.mxu0 0.0
    %1192 = vmatprep.subr.mxu0 0.0
    %1193 = vmatpush1.msra.mxu0 0.0
    %1194 = vmatprep.subr.mxu0 0.0
    %1195 = vmatpush1.msra.mxu0 0.0
    %1196 = vmatprep.subr.mxu0 0.0
    %1197 = vmatpush1.msra.mxu0 0.0
    %1198 = vmatprep.subr.mxu0 0.0
    %1199 = vmatpush1.msra.mxu0 0.0
    %1200 = vmatprep.subr.mxu0 0.0
    %1201 = vmatpush1.msra.mxu0 0.0
    %1202 = vmatprep.subr.mxu0 0.0
    %1203 = vmatpush1.msra.mxu0 0.0
    %1204 = vmatprep.subr.mxu0 0.0
    %1205 = vmatpush1.msra.mxu0 0.0
    %1206 = vmatprep.subr.mxu0 0.0
    %1207 = vmatpush1.msra.mxu0 0.0
    %1208 = vmatprep.subr.mxu0 0.0
    %1209 = vmatpush1.msra.mxu0 0.0
    %1210 = vmatprep.subr.mxu0 0.0
    %1211 = vmatpush1.msra.mxu0 0.0
    %1212 = vmatprep.subr.mxu0 0.0
    %1213 = vmatpush1.msra.mxu0 0.0
    %1214 = vmatprep.subr.mxu0 0.0
    %1215 = vmatpush1.msra.mxu0 0.0
    %1216 = vmatprep.subr.mxu0 0.0
    %1217 = vmatpush1.msra.mxu0 0.0
    %1218 = vmatprep.subr.mxu0 0.0
    %1219 = vmatpush1.msra.mxu0 0.0
    %1220 = vmatprep.subr.mxu0 0.0
    %1221 = vmatpush1.msra.mxu0 0.0
    %1222 = vmatprep.subr.mxu0 0.0
    %1223 = vmatpush1.msra.mxu0 0.0
    %1224 = vmatprep.subr.mxu0 0.0
    %1225 = vmatpush1.msra.mxu0 0.0
    %1226 = vmatprep.subr.mxu0 0.0
    %1227 = vmatpush1.msra.mxu0 0.0
    %1228 = vmatprep.subr.mxu0 0.0
    %1229 = vmatpush1.msra.mxu0 0.0
    %1230 = vmatprep.subr.mxu0 0.0
    %1231 = vmatpush1.msra.mxu0 0.0
    %1232 = vmatprep.subr.mxu0 0.0
    %1233 = vmatpush1.msra.mxu0 0.0
    %1234 = vmatprep.subr.mxu0 0.0
    %1235 = vmatpush1.msra.mxu0 0.0
    %1236 = vmatprep.subr.mxu0 0.0
    %1237 = vmatpush1.msra.mxu0 0.0
    %1238 = vmatprep.mubr.f32.mxu0 0.0
    %1239 = vmatmul.mubr.f32.gmra.mrb[0].mxu0 %v1172
    %v1240 = vpop.f32.mrb[0].mxu0
    %v1241 = vadd.f32 0.0, %v1240
    %v1242 = vpop.f32.mrb[0].mxu0
    %1243 = vdwg.mxu0
    %v1244 = vadd.f32 %v1070, %v1241
    %v1245 = vxor.u32 %v1244, 2147483648
    %v1246 = vmul.f32 %v1245, 1.442695
    %v1247 = vpow.pop %v1246
    %v1248 = vadd.f32 %v1247, 1.0
    %v1249 = vrcp.pop %v1248
    %v1250 = vmul.f32 1.0, %v1249
    %v1251 = vtanh.pop %v1244
    %v1252 = vsel %vm51, %v1251, %v1250
    %v1253 = vmul.f32 %v1252, %v1162
    %1255 = vrot.lane.b32.xlu0 %v1252, 64
    %v1256 = vpop.permute.xlu0 %1255
    %v1258 = vmul.f32 %v1252, %v1256
    %1260 = vrot.lane.b32.xlu0 %v1258, 32
    %v1261 = vpop.permute.xlu0 %1260
    %v1263 = vadd.f32 %v1253, %v1261
    %v1264 = vtanh.pop %v1263
    %1266 = vrot.lane.b32.xlu0 %v1264, 64
    %v1267 = vpop.permute.xlu0 %1266
    %v1269 = vmul.f32 %v1252, %v1267
    %1271 = vrot.lane.b32.xlu0 %v1269, 32
    %v1272 = vpop.permute.xlu0 %1271
    %v1273 = vsel %vm142, %v1272, 0
    %1275 = vmatprep.subr.mxu0 0.0
    %1276 = vmatpush1.msra.mxu0 %v37
    %1277 = vmatprep.subr.mxu0 0.0
    %1278 = vmatpush1.msra.mxu0 %v38
    %1279 = vmatprep.subr.mxu0 0.0
    %1280 = vmatpush1.msra.mxu0 %v39
    %1281 = vmatprep.subr.mxu0 0.0
    %1282 = vmatpush1.msra.mxu0 %v40
    %1283 = vmatprep.subr.mxu0 0.0
    %1284 = vmatpush1.msra.mxu0 0.0
    %1285 = vmatprep.subr.mxu0 0.0
    %1286 = vmatpush1.msra.mxu0 0.0
    %1287 = vmatprep.subr.mxu0 0.0
    %1288 = vmatpush1.msra.mxu0 0.0
    %1289 = vmatprep.subr.mxu0 0.0
    %1290 = vmatpush1.msra.mxu0 0.0
    %1291 = vmatprep.subr.mxu0 0.0
    %1292 = vmatpush1.msra.mxu0 0.0
    %1293 = vmatprep.subr.mxu0 0.0
    %1294 = vmatpush1.msra.mxu0 0.0
    %1295 = vmatprep.subr.mxu0 0.0
    %1296 = vmatpush1.msra.mxu0 0.0
    %1297 = vmatprep.subr.mxu0 0.0
    %1298 = vmatpush1.msra.mxu0 0.0
    %1299 = vmatprep.subr.mxu0 0.0
    %1300 = vmatpush1.msra.mxu0 0.0
    %1301 = vmatprep.subr.mxu0 0.0
    %1302 = vmatpush1.msra.mxu0 0.0
    %1303 = vmatprep.subr.mxu0 0.0
    %1304 = vmatpush1.msra.mxu0 0.0
    %1305 = vmatprep.subr.mxu0 0.0
    %1306 = vmatpush1.msra.mxu0 0.0
    %1307 = vmatprep.subr.mxu0 0.0
    %1308 = vmatpush1.msra.mxu0 0.0
    %1309 = vmatprep.subr.mxu0 0.0
    %1310 = vmatpush1.msra.mxu0 0.0
    %1311 = vmatprep.subr.mxu0 0.0
    %1312 = vmatpush1.msra.mxu0 0.0
    %1313 = vmatprep.subr.mxu0 0.0
    %1314 = vmatpush1.msra.mxu0 0.0
    %1315 = vmatprep.subr.mxu0 0.0
    %1316 = vmatpush1.msra.mxu0 0.0
    %1317 = vmatprep.subr.mxu0 0.0
    %1318 = vmatpush1.msra.mxu0 0.0
    %1319 = vmatprep.subr.mxu0 0.0
    %1320 = vmatpush1.msra.mxu0 0.0
    %1321 = vmatprep.subr.mxu0 0.0
    %1322 = vmatpush1.msra.mxu0 0.0
    %1323 = vmatprep.subr.mxu0 0.0
    %1324 = vmatpush1.msra.mxu0 0.0
    %1325 = vmatprep.subr.mxu0 0.0
    %1326 = vmatpush1.msra.mxu0 0.0
    %1327 = vmatprep.subr.mxu0 0.0
    %1328 = vmatpush1.msra.mxu0 0.0
    %1329 = vmatprep.subr.mxu0 0.0
    %1330 = vmatpush1.msra.mxu0 0.0
    %1331 = vmatprep.subr.mxu0 0.0
    %1332 = vmatpush1.msra.mxu0 0.0
    %1333 = vmatprep.subr.mxu0 0.0
    %1334 = vmatpush1.msra.mxu0 0.0
    %1335 = vmatprep.subr.mxu0 0.0
    %1336 = vmatpush1.msra.mxu0 0.0
    %1337 = vmatprep.subr.mxu0 0.0
    %1338 = vmatpush1.msra.mxu0 0.0
    %1339 = vmatprep.mubr.f32.mxu0 0.0
    %1340 = vmatmul.mubr.f32.gmra.mrb[0].mxu0 %v1273
    %v1341 = vpop.f32.mrb[0].mxu0
    %v1342 = vadd.f32 0.0, %v1341
    %v1343 = vpop.f32.mrb[0].mxu0
    %1344 = vdwg.mxu0
    %v1345 = vadd.f32 %v1070, %v1342
    %v1346 = vxor.u32 %v1345, 2147483648
    %v1347 = vmul.f32 %v1346, 1.442695
    %v1348 = vpow.pop %v1347
    %v1349 = vadd.f32 %v1348, 1.0
    %v1350 = vrcp.pop %v1349
    %v1351 = vmul.f32 1.0, %v1350
    %v1352 = vtanh.pop %v1345
    %v1353 = vsel %vm51, %v1352, %v1351
    %v1354 = vmul.f32 %v1353, %v1263
    %1356 = vrot.lane.b32.xlu0 %v1353, 64
    %v1357 = vpop.permute.xlu0 %1356
    %v1359 = vmul.f32 %v1353, %v1357
    %1361 = vrot.lane.b32.xlu0 %v1359, 32
    %v1362 = vpop.permute.xlu0 %1361
    %v1364 = vadd.f32 %v1354, %v1362
    %v1365 = vtanh.pop %v1364
    %1367 = vrot.lane.b32.xlu0 %v1365, 64
    %v1368 = vpop.permute.xlu0 %1367
    %v1370 = vmul.f32 %v1353, %v1368
    %1372 = vrot.lane.b32.xlu0 %v1370, 32
    %v1373 = vpop.permute.xlu0 %1372
    %v1374 = vsel %vm142, %v1373, 0
    %1376 = vmatprep.subr.mxu0 0.0
    %1377 = vmatpush1.msra.mxu0 %v37
    %1378 = vmatprep.subr.mxu0 0.0
    %1379 = vmatpush1.msra.mxu0 %v38
    %1380 = vmatprep.subr.mxu0 0.0
    %1381 = vmatpush1.msra.mxu0 %v39
    %1382 = vmatprep.subr.mxu0 0.0
    %1383 = vmatpush1.msra.mxu0 %v40
    %1384 = vmatprep.subr.mxu0 0.0
    %1385 = vmatpush1.msra.mxu0 0.0
    %1386 = vmatprep.subr.mxu0 0.0
    %1387 = vmatpush1.msra.mxu0 0.0
    %1388 = vmatprep.subr.mxu0 0.0
    %1389 = vmatpush1.msra.mxu0 0.0
    %1390 = vmatprep.subr.mxu0 0.0
    %1391 = vmatpush1.msra.mxu0 0.0
    %1392 = vmatprep.subr.mxu0 0.0
    %1393 = vmatpush1.msra.mxu0 0.0
    %1394 = vmatprep.subr.mxu0 0.0
    %1395 = vmatpush1.msra.mxu0 0.0
    %1396 = vmatprep.subr.mxu0 0.0
    %1397 = vmatpush1.msra.mxu0 0.0
    %1398 = vmatprep.subr.mxu0 0.0
    %1399 = vmatpush1.msra.mxu0 0.0
    %1400 = vmatprep.subr.mxu0 0.0
    %1401 = vmatpush1.msra.mxu0 0.0
    %1402 = vmatprep.subr.mxu0 0.0
    %1403 = vmatpush1.msra.mxu0 0.0
    %1404 = vmatprep.subr.mxu0 0.0
    %1405 = vmatpush1.msra.mxu0 0.0
    %1406 = vmatprep.subr.mxu0 0.0
    %1407 = vmatpush1.msra.mxu0 0.0
    %1408 = vmatprep.subr.mxu0 0.0
    %1409 = vmatpush1.msra.mxu0 0.0
    %1410 = vmatprep.subr.mxu0 0.0
    %1411 = vmatpush1.msra.mxu0 0.0
    %1412 = vmatprep.subr.mxu0 0.0
    %1413 = vmatpush1.msra.mxu0 0.0
    %1414 = vmatprep.subr.mxu0 0.0
    %1415 = vmatpush1.msra.mxu0 0.0
    %1416 = vmatprep.subr.mxu0 0.0
    %1417 = vmatpush1.msra.mxu0 0.0
    %1418 = vmatprep.subr.mxu0 0.0
    %1419 = vmatpush1.msra.mxu0 0.0
    %1420 = vmatprep.subr.mxu0 0.0
    %1421 = vmatpush1.msra.mxu0 0.0
    %1422 = vmatprep.subr.mxu0 0.0
    %1423 = vmatpush1.msra.mxu0 0.0
    %1424 = vmatprep.subr.mxu0 0.0
    %1425 = vmatpush1.msra.mxu0 0.0
    %1426 = vmatprep.subr.mxu0 0.0
    %1427 = vmatpush1.msra.mxu0 0.0
    %1428 = vmatprep.subr.mxu0 0.0
    %1429 = vmatpush1.msra.mxu0 0.0
    %1430 = vmatprep.subr.mxu0 0.0
    %1431 = vmatpush1.msra.mxu0 0.0
    %1432 = vmatprep.subr.mxu0 0.0
    %1433 = vmatpush1.msra.mxu0 0.0
    %1434 = vmatprep.subr.mxu0 0.0
    %1435 = vmatpush1.msra.mxu0 0.0
    %1436 = vmatprep.subr.mxu0 0.0
    %1437 = vmatpush1.msra.mxu0 0.0
    %1438 = vmatprep.subr.mxu0 0.0
    %1439 = vmatpush1.msra.mxu0 0.0
    %1440 = vmatprep.mubr.f32.mxu0 0.0
    %1441 = vmatmul.mubr.f32.gmra.mrb[0].mxu0 %v1374
    %v1442 = vpop.f32.mrb[0].mxu0
    %v1443 = vadd.f32 0.0, %v1442
    %v1444 = vpop.f32.mrb[0].mxu0
    %1445 = vdwg.mxu0
    %v1446 = vadd.f32 %v1070, %v1443
    %v1447 = vxor.u32 %v1446, 2147483648
    %v1448 = vmul.f32 %v1447, 1.442695
    %v1449 = vpow.pop %v1448
    %v1450 = vadd.f32 %v1449, 1.0
    %v1451 = vrcp.pop %v1450
    %v1452 = vmul.f32 1.0, %v1451
    %v1453 = vtanh.pop %v1446
    %v1454 = vsel %vm51, %v1453, %v1452
    %v1455 = vmul.f32 %v1454, %v1364
    %1457 = vrot.lane.b32.xlu0 %v1454, 64
    %v1458 = vpop.permute.xlu0 %1457
    %v1460 = vmul.f32 %v1454, %v1458
    %1462 = vrot.lane.b32.xlu0 %v1460, 32
    %v1463 = vpop.permute.xlu0 %1462
    %v1465 = vadd.f32 %v1455, %v1463
    %v1466 = vtanh.pop %v1465
    %1468 = vrot.lane.b32.xlu0 %v1466, 64
    %v1469 = vpop.permute.xlu0 %1468
    %v1471 = vmul.f32 %v1454, %v1469
    %1473 = vrot.lane.b32.xlu0 %v1471, 32
    %v1474 = vpop.permute.xlu0 %1473
    %v1475 = vsel %vm142, %v1474, 0
    %1477 = vmatprep.subr.mxu0 0.0
    %1478 = vmatpush1.msra.mxu0 %v37
    %1479 = vmatprep.subr.mxu0 0.0
    %1480 = vmatpush1.msra.mxu0 %v38
    %1481 = vmatprep.subr.mxu0 0.0
    %1482 = vmatpush1.msra.mxu0 %v39
    %1483 = vmatprep.subr.mxu0 0.0
    %1484 = vmatpush1.msra.mxu0 %v40
    %1485 = vmatprep.subr.mxu0 0.0
    %1486 = vmatpush1.msra.mxu0 0.0
    %1487 = vmatprep.subr.mxu0 0.0
    %1488 = vmatpush1.msra.mxu0 0.0
    %1489 = vmatprep.subr.mxu0 0.0
    %1490 = vmatpush1.msra.mxu0 0.0
    %1491 = vmatprep.subr.mxu0 0.0
    %1492 = vmatpush1.msra.mxu0 0.0
    %1493 = vmatprep.subr.mxu0 0.0
    %1494 = vmatpush1.msra.mxu0 0.0
    %1495 = vmatprep.subr.mxu0 0.0
    %1496 = vmatpush1.msra.mxu0 0.0
    %1497 = vmatprep.subr.mxu0 0.0
    %1498 = vmatpush1.msra.mxu0 0.0
    %1499 = vmatprep.subr.mxu0 0.0
    %1500 = vmatpush1.msra.mxu0 0.0
    %1501 = vmatprep.subr.mxu0 0.0
    %1502 = vmatpush1.msra.mxu0 0.0
    %1503 = vmatprep.subr.mxu0 0.0
    %1504 = vmatpush1.msra.mxu0 0.0
    %1505 = vmatprep.subr.mxu0 0.0
    %1506 = vmatpush1.msra.mxu0 0.0
    %1507 = vmatprep.subr.mxu0 0.0
    %1508 = vmatpush1.msra.mxu0 0.0
    %1509 = vmatprep.subr.mxu0 0.0
    %1510 = vmatpush1.msra.mxu0 0.0
    %1511 = vmatprep.subr.mxu0 0.0
    %1512 = vmatpush1.msra.mxu0 0.0
    %1513 = vmatprep.subr.mxu0 0.0
    %1514 = vmatpush1.msra.mxu0 0.0
    %1515 = vmatprep.subr.mxu0 0.0
    %1516 = vmatpush1.msra.mxu0 0.0
    %1517 = vmatprep.subr.mxu0 0.0
    %1518 = vmatpush1.msra.mxu0 0.0
    %1519 = vmatprep.subr.mxu0 0.0
    %1520 = vmatpush1.msra.mxu0 0.0
    %1521 = vmatprep.subr.mxu0 0.0
    %1522 = vmatpush1.msra.mxu0 0.0
    %1523 = vmatprep.subr.mxu0 0.0
    %1524 = vmatpush1.msra.mxu0 0.0
    %1525 = vmatprep.subr.mxu0 0.0
    %1526 = vmatpush1.msra.mxu0 0.0
    %1527 = vmatprep.subr.mxu0 0.0
    %1528 = vmatpush1.msra.mxu0 0.0
    %1529 = vmatprep.subr.mxu0 0.0
    %1530 = vmatpush1.msra.mxu0 0.0
    %1531 = vmatprep.subr.mxu0 0.0
    %1532 = vmatpush1.msra.mxu0 0.0
    %1533 = vmatprep.subr.mxu0 0.0
    %1534 = vmatpush1.msra.mxu0 0.0
    %1535 = vmatprep.subr.mxu0 0.0
    %1536 = vmatpush1.msra.mxu0 0.0
    %1537 = vmatprep.subr.mxu0 0.0
    %1538 = vmatpush1.msra.mxu0 0.0
    %1539 = vmatprep.subr.mxu0 0.0
    %1540 = vmatpush1.msra.mxu0 0.0
    %1541 = vmatprep.mubr.f32.mxu0 0.0
    %1542 = vmatmul.mubr.f32.gmra.mrb[0].mxu0 %v1475
    %v1543 = vpop.f32.mrb[0].mxu0
    %v1544 = vadd.f32 0.0, %v1543
    %v1545 = vpop.f32.mrb[0].mxu0
    %1546 = vdwg.mxu0
    %v1547 = vadd.f32 %v1070, %v1544
    %v1548 = vxor.u32 %v1547, 2147483648
    %v1549 = vmul.f32 %v1548, 1.442695
    %v1550 = vpow.pop %v1549
    %v1551 = vadd.f32 %v1550, 1.0
    %v1552 = vrcp.pop %v1551
    %v1553 = vmul.f32 1.0, %v1552
    %v1554 = vtanh.pop %v1547
    %v1555 = vsel %vm51, %v1554, %v1553
    %v1556 = vmul.f32 %v1555, %v1465
    %1558 = vrot.lane.b32.xlu0 %v1555, 64
    %v1559 = vpop.permute.xlu0 %1558
    %v1561 = vmul.f32 %v1555, %v1559
    %1563 = vrot.lane.b32.xlu0 %v1561, 32
    %v1564 = vpop.permute.xlu0 %1563
    %v1566 = vadd.f32 %v1556, %v1564
    %v1567 = vtanh.pop %v1566
    %1569 = vrot.lane.b32.xlu0 %v1567, 64
    %v1570 = vpop.permute.xlu0 %1569
    %v1572 = vmul.f32 %v1555, %v1570
    %1574 = vrot.lane.b32.xlu0 %v1572, 32
    %v1575 = vpop.permute.xlu0 %1574
    %v1576 = vsel %vm142, %v1575, 0
    %1578 = vmatprep.subr.mxu0 0.0
    %1579 = vmatpush1.msra.mxu0 %v37
    %1580 = vmatprep.subr.mxu0 0.0
    %1581 = vmatpush1.msra.mxu0 %v38
    %1582 = vmatprep.subr.mxu0 0.0
    %1583 = vmatpush1.msra.mxu0 %v39
    %1584 = vmatprep.subr.mxu0 0.0
    %1585 = vmatpush1.msra.mxu0 %v40
    %1586 = vmatprep.subr.mxu0 0.0
    %1587 = vmatpush1.msra.mxu0 0.0
    %1588 = vmatprep.subr.mxu0 0.0
    %1589 = vmatpush1.msra.mxu0 0.0
    %1590 = vmatprep.subr.mxu0 0.0
    %1591 = vmatpush1.msra.mxu0 0.0
    %1592 = vmatprep.subr.mxu0 0.0
    %1593 = vmatpush1.msra.mxu0 0.0
    %1594 = vmatprep.subr.mxu0 0.0
    %1595 = vmatpush1.msra.mxu0 0.0
    %1596 = vmatprep.subr.mxu0 0.0
    %1597 = vmatpush1.msra.mxu0 0.0
    %1598 = vmatprep.subr.mxu0 0.0
    %1599 = vmatpush1.msra.mxu0 0.0
    %1600 = vmatprep.subr.mxu0 0.0
    %1601 = vmatpush1.msra.mxu0 0.0
    %1602 = vmatprep.subr.mxu0 0.0
    %1603 = vmatpush1.msra.mxu0 0.0
    %1604 = vmatprep.subr.mxu0 0.0
    %1605 = vmatpush1.msra.mxu0 0.0
    %1606 = vmatprep.subr.mxu0 0.0
    %1607 = vmatpush1.msra.mxu0 0.0
    %1608 = vmatprep.subr.mxu0 0.0
    %1609 = vmatpush1.msra.mxu0 0.0
    %1610 = vmatprep.subr.mxu0 0.0
    %1611 = vmatpush1.msra.mxu0 0.0
    %1612 = vmatprep.subr.mxu0 0.0
    %1613 = vmatpush1.msra.mxu0 0.0
    %1614 = vmatprep.subr.mxu0 0.0
    %1615 = vmatpush1.msra.mxu0 0.0
    %1616 = vmatprep.subr.mxu0 0.0
    %1617 = vmatpush1.msra.mxu0 0.0
    %1618 = vmatprep.subr.mxu0 0.0
    %1619 = vmatpush1.msra.mxu0 0.0
    %1620 = vmatprep.subr.mxu0 0.0
    %1621 = vmatpush1.msra.mxu0 0.0
    %1622 = vmatprep.subr.mxu0 0.0
    %1623 = vmatpush1.msra.mxu0 0.0
    %1624 = vmatprep.subr.mxu0 0.0
    %1625 = vmatpush1.msra.mxu0 0.0
    %1626 = vmatprep.subr.mxu0 0.0
    %1627 = vmatpush1.msra.mxu0 0.0
    %1628 = vmatprep.subr.mxu0 0.0
    %1629 = vmatpush1.msra.mxu0 0.0
    %1630 = vmatprep.subr.mxu0 0.0
    %1631 = vmatpush1.msra.mxu0 0.0
    %1632 = vmatprep.subr.mxu0 0.0
    %1633 = vmatpush1.msra.mxu0 0.0
    %1634 = vmatprep.subr.mxu0 0.0
    %1635 = vmatpush1.msra.mxu0 0.0
    %1636 = vmatprep.subr.mxu0 0.0
    %1637 = vmatpush1.msra.mxu0 0.0
    %1638 = vmatprep.subr.mxu0 0.0
    %1639 = vmatpush1.msra.mxu0 0.0
    %1640 = vmatprep.subr.mxu0 0.0
    %1641 = vmatpush1.msra.mxu0 0.0
    %1642 = vmatprep.mubr.f32.mxu0 0.0
    %1643 = vmatmul.mubr.f32.gmra.mrb[0].mxu0 %v1576
    %v1644 = vpop.f32.mrb[0].mxu0
    %v1645 = vadd.f32 0.0, %v1644
    %v1646 = vpop.f32.mrb[0].mxu0
    %1647 = vdwg.mxu0
    %v1648 = vadd.f32 %v1070, %v1645
    %v1649 = vxor.u32 %v1648, 2147483648
    %v1650 = vmul.f32 %v1649, 1.442695
    %v1651 = vpow.pop %v1650
    %v1652 = vadd.f32 %v1651, 1.0
    %v1653 = vrcp.pop %v1652
    %v1654 = vmul.f32 1.0, %v1653
    %v1655 = vtanh.pop %v1648
    %v1656 = vsel %vm51, %v1655, %v1654
    %v1657 = vmul.f32 %v1656, %v1566
    %1659 = vrot.lane.b32.xlu0 %v1656, 64
    %v1660 = vpop.permute.xlu0 %1659
    %v1662 = vmul.f32 %v1656, %v1660
    %1664 = vrot.lane.b32.xlu0 %v1662, 32
    %v1665 = vpop.permute.xlu0 %1664
    %v1667 = vadd.f32 %v1657, %v1665
    %v1668 = vtanh.pop %v1667
    %1670 = vrot.lane.b32.xlu0 %v1668, 64
    %v1671 = vpop.permute.xlu0 %1670
    %v1673 = vmul.f32 %v1656, %v1671
    %1675 = vrot.lane.b32.xlu0 %v1673, 32
    %v1676 = vpop.permute.xlu0 %1675
    %v1677 = vsel %vm142, %v1676, 0
    %1679 = vmatprep.subr.mxu0 0.0
    %1680 = vmatpush1.msra.mxu0 %v37
    %1681 = vmatprep.subr.mxu0 0.0
    %1682 = vmatpush1.msra.mxu0 %v38
    %1683 = vmatprep.subr.mxu0 0.0
    %1684 = vmatpush1.msra.mxu0 %v39
    %1685 = vmatprep.subr.mxu0 0.0
    %1686 = vmatpush1.msra.mxu0 %v40
    %1687 = vmatprep.subr.mxu0 0.0
    %1688 = vmatpush1.msra.mxu0 0.0
    %1689 = vmatprep.subr.mxu0 0.0
    %1690 = vmatpush1.msra.mxu0 0.0
    %1691 = vmatprep.subr.mxu0 0.0
    %1692 = vmatpush1.msra.mxu0 0.0
    %1693 = vmatprep.subr.mxu0 0.0
    %1694 = vmatpush1.msra.mxu0 0.0
    %1695 = vmatprep.subr.mxu0 0.0
    %1696 = vmatpush1.msra.mxu0 0.0
    %1697 = vmatprep.subr.mxu0 0.0
    %1698 = vmatpush1.msra.mxu0 0.0
    %1699 = vmatprep.subr.mxu0 0.0
    %1700 = vmatpush1.msra.mxu0 0.0
    %1701 = vmatprep.subr.mxu0 0.0
    %1702 = vmatpush1.msra.mxu0 0.0
    %1703 = vmatprep.subr.mxu0 0.0
    %1704 = vmatpush1.msra.mxu0 0.0
    %1705 = vmatprep.subr.mxu0 0.0
    %1706 = vmatpush1.msra.mxu0 0.0
    %1707 = vmatprep.subr.mxu0 0.0
    %1708 = vmatpush1.msra.mxu0 0.0
    %1709 = vmatprep.subr.mxu0 0.0
    %1710 = vmatpush1.msra.mxu0 0.0
    %1711 = vmatprep.subr.mxu0 0.0
    %1712 = vmatpush1.msra.mxu0 0.0
    %1713 = vmatprep.subr.mxu0 0.0
    %1714 = vmatpush1.msra.mxu0 0.0
    %1715 = vmatprep.subr.mxu0 0.0
    %1716 = vmatpush1.msra.mxu0 0.0
    %1717 = vmatprep.subr.mxu0 0.0
    %1718 = vmatpush1.msra.mxu0 0.0
    %1719 = vmatprep.subr.mxu0 0.0
    %1720 = vmatpush1.msra.mxu0 0.0
    %1721 = vmatprep.subr.mxu0 0.0
    %1722 = vmatpush1.msra.mxu0 0.0
    %1723 = vmatprep.subr.mxu0 0.0
    %1724 = vmatpush1.msra.mxu0 0.0
    %1725 = vmatprep.subr.mxu0 0.0
    %1726 = vmatpush1.msra.mxu0 0.0
    %1727 = vmatprep.subr.mxu0 0.0
    %1728 = vmatpush1.msra.mxu0 0.0
    %1729 = vmatprep.subr.mxu0 0.0
    %1730 = vmatpush1.msra.mxu0 0.0
    %1731 = vmatprep.subr.mxu0 0.0
    %1732 = vmatpush1.msra.mxu0 0.0
    %1733 = vmatprep.subr.mxu0 0.0
    %1734 = vmatpush1.msra.mxu0 0.0
    %1735 = vmatprep.subr.mxu0 0.0
    %1736 = vmatpush1.msra.mxu0 0.0
    %1737 = vmatprep.subr.mxu0 0.0
    %1738 = vmatpush1.msra.mxu0 0.0
    %1739 = vmatprep.subr.mxu0 0.0
    %1740 = vmatpush1.msra.mxu0 0.0
    %1741 = vmatprep.subr.mxu0 0.0
    %1742 = vmatpush1.msra.mxu0 0.0
    %1743 = vmatprep.mubr.f32.mxu0 0.0
    %1744 = vmatmul.mubr.f32.gmra.mrb[0].mxu0 %v1677
    %v1745 = vpop.f32.mrb[0].mxu0
    %v1746 = vadd.f32 0.0, %v1745
    %v1747 = vpop.f32.mrb[0].mxu0
    %1748 = vdwg.mxu0
    %v1749 = vadd.f32 %v1070, %v1746
    %v1750 = vxor.u32 %v1749, 2147483648
    %v1751 = vmul.f32 %v1750, 1.442695
    %v1752 = vpow.pop %v1751
    %v1753 = vadd.f32 %v1752, 1.0
    %v1754 = vrcp.pop %v1753
    %v1755 = vmul.f32 1.0, %v1754
    %v1756 = vtanh.pop %v1749
    %v1757 = vsel %vm51, %v1756, %v1755
    %v1758 = vmul.f32 %v1757, %v1667
    %1760 = vrot.lane.b32.xlu0 %v1757, 64
    %v1761 = vpop.permute.xlu0 %1760
    %v1763 = vmul.f32 %v1757, %v1761
    %1765 = vrot.lane.b32.xlu0 %v1763, 32
    %v1766 = vpop.permute.xlu0 %1765
    %v1768 = vadd.f32 %v1758, %v1766
    %v1769 = vtanh.pop %v1768
    %1771 = vrot.lane.b32.xlu0 %v1769, 64
    %v1772 = vpop.permute.xlu0 %1771
    %v1774 = vmul.f32 %v1757, %v1772
    %1776 = vrot.lane.b32.xlu0 %v1774, 32
    %v1777 = vpop.permute.xlu0 %1776
    %v1778 = vsel %vm142, %v1777, 0
    %1780 = vmatprep.subr.mxu0 0.0
    %1781 = vmatpush1.msra.mxu0 %v37
    %1782 = vmatprep.subr.mxu0 0.0
    %1783 = vmatpush1.msra.mxu0 %v38
    %1784 = vmatprep.subr.mxu0 0.0
    %1785 = vmatpush1.msra.mxu0 %v39
    %1786 = vmatprep.subr.mxu0 0.0
    %1787 = vmatpush1.msra.mxu0 %v40
    %1788 = vmatprep.subr.mxu0 0.0
    %1789 = vmatpush1.msra.mxu0 0.0
    %1790 = vmatprep.subr.mxu0 0.0
    %1791 = vmatpush1.msra.mxu0 0.0
    %1792 = vmatprep.subr.mxu0 0.0
    %1793 = vmatpush1.msra.mxu0 0.0
    %1794 = vmatprep.subr.mxu0 0.0
    %1795 = vmatpush1.msra.mxu0 0.0
    %1796 = vmatprep.subr.mxu0 0.0
    %1797 = vmatpush1.msra.mxu0 0.0
    %1798 = vmatprep.subr.mxu0 0.0
    %1799 = vmatpush1.msra.mxu0 0.0
    %1800 = vmatprep.subr.mxu0 0.0
    %1801 = vmatpush1.msra.mxu0 0.0
    %1802 = vmatprep.subr.mxu0 0.0
    %1803 = vmatpush1.msra.mxu0 0.0
    %1804 = vmatprep.subr.mxu0 0.0
    %1805 = vmatpush1.msra.mxu0 0.0
    %1806 = vmatprep.subr.mxu0 0.0
    %1807 = vmatpush1.msra.mxu0 0.0
    %1808 = vmatprep.subr.mxu0 0.0
    %1809 = vmatpush1.msra.mxu0 0.0
    %1810 = vmatprep.subr.mxu0 0.0
    %1811 = vmatpush1.msra.mxu0 0.0
    %1812 = vmatprep.subr.mxu0 0.0
    %1813 = vmatpush1.msra.mxu0 0.0
    %1814 = vmatprep.subr.mxu0 0.0
    %1815 = vmatpush1.msra.mxu0 0.0
    %1816 = vmatprep.subr.mxu0 0.0
    %1817 = vmatpush1.msra.mxu0 0.0
    %1818 = vmatprep.subr.mxu0 0.0
    %1819 = vmatpush1.msra.mxu0 0.0
    %1820 = vmatprep.subr.mxu0 0.0
    %1821 = vmatpush1.msra.mxu0 0.0
    %1822 = vmatprep.subr.mxu0 0.0
    %1823 = vmatpush1.msra.mxu0 0.0
    %1824 = vmatprep.subr.mxu0 0.0
    %1825 = vmatpush1.msra.mxu0 0.0
    %1826 = vmatprep.subr.mxu0 0.0
    %1827 = vmatpush1.msra.mxu0 0.0
    %1828 = vmatprep.subr.mxu0 0.0
    %1829 = vmatpush1.msra.mxu0 0.0
    %1830 = vmatprep.subr.mxu0 0.0
    %1831 = vmatpush1.msra.mxu0 0.0
    %1832 = vmatprep.subr.mxu0 0.0
    %1833 = vmatpush1.msra.mxu0 0.0
    %1834 = vmatprep.subr.mxu0 0.0
    %1835 = vmatpush1.msra.mxu0 0.0
    %1836 = vmatprep.subr.mxu0 0.0
    %1837 = vmatpush1.msra.mxu0 0.0
    %1838 = vmatprep.subr.mxu0 0.0
    %1839 = vmatpush1.msra.mxu0 0.0
    %1840 = vmatprep.subr.mxu0 0.0
    %1841 = vmatpush1.msra.mxu0 0.0
    %1842 = vmatprep.subr.mxu0 0.0
    %1843 = vmatpush1.msra.mxu0 0.0
    %1844 = vmatprep.mubr.f32.mxu0 0.0
    %1845 = vmatmul.mubr.f32.gmra.mrb[0].mxu0 %v1778
    %v1846 = vpop.f32.mrb[0].mxu0
    %v1847 = vadd.f32 0.0, %v1846
    %v1848 = vpop.f32.mrb[0].mxu0
    %1849 = vdwg.mxu0
    %v1850 = vadd.f32 %v1070, %v1847
    %v1851 = vxor.u32 %v1850, 2147483648
    %v1852 = vmul.f32 %v1851, 1.442695
    %v1853 = vpow.pop %v1852
    %v1854 = vadd.f32 %v1853, 1.0
    %v1855 = vrcp.pop %v1854
    %v1856 = vmul.f32 1.0, %v1855
    %v1857 = vtanh.pop %v1850
    %v1858 = vsel %vm51, %v1857, %v1856
    %v1859 = vmul.f32 %v1858, %v1768
    %1861 = vrot.lane.b32.xlu0 %v1858, 64
    %v1862 = vpop.permute.xlu0 %1861
    %v1864 = vmul.f32 %v1858, %v1862
    %1866 = vrot.lane.b32.xlu0 %v1864, 32
    %v1867 = vpop.permute.xlu0 %1866
    %v1869 = vadd.f32 %v1859, %v1867
    %v1870 = vtanh.pop %v1869
    %1872 = vrot.lane.b32.xlu0 %v1870, 64
    %v1873 = vpop.permute.xlu0 %1872
    %v1875 = vmul.f32 %v1858, %v1873
    %v1876 = vrot.slane %v1269, 6
    %v1878 = vrot.slane %v1370, 4
    %v1880 = vrot.slane %v1471, 2
    %v1882 = vrot.slane %v1673, 6
    %v1884 = vrot.slane %v1774, 4
    %v1887 = vrot.slane %v1875, 2
    %vm1889 = vcmask 1041408
    %v1890 = vsel %vm1889, %v1168, %v1876
    %v1891 = vsel %vm63, %v1890, %v1878
    %vm1892 = vcmask 1045504
    %v1893 = vsel %vm1892, %v1891, %v1880
    %v1894 = vsel %vm1889, %v1572, %v1882
    %v1895 = vsel %vm63, %v1894, %v1884
    %v1896 = vsel %vm1892, %v1895, %v1887
    %v1897 = vlaneseq
    %v1898 = vshrl.u32 %v1897, 7
    %v1899 = vsub.s32 0, %v1898
    %v1900 = vrot.slane %v46, %v1899
    %1903 = vrot.lane.b32.xlu0 %v1893, 32
    %v1904 = vpop.permute.xlu0 %1903
    %1905 = vrot.lane.b32.xlu0 %v1896, 32
    %v1906 = vpop.permute.xlu0 %1905
    %v1907 = vsel %vm142, %v1904, 0
    %v1909 = vsel %vm142, %v1906, 0
    %1911 = vmatprep.subr.mxu0 0.0
    %1912 = vmatpush1.msra.mxu0 %v42
    %1913 = vmatprep.subr.mxu0 0.0
    %1914 = vmatpush1.msra.mxu0 %v43
    %1915 = vmatprep.subr.mxu0 0.0
    %1916 = vmatpush1.msra.mxu0 %v44
    %1917 = vmatprep.subr.mxu0 0.0
    %1918 = vmatpush1.msra.mxu0 %v45
    %1919 = vmatprep.subr.mxu0 0.0
    %1920 = vmatpush1.msra.mxu0 0.0
    %1921 = vmatprep.subr.mxu0 0.0
    %1922 = vmatpush1.msra.mxu0 0.0
    %1923 = vmatprep.subr.mxu0 0.0
    %1924 = vmatpush1.msra.mxu0 0.0
    %1925 = vmatprep.subr.mxu0 0.0
    %1926 = vmatpush1.msra.mxu0 0.0
    %1927 = vmatprep.subr.mxu0 0.0
    %1928 = vmatpush1.msra.mxu0 0.0
    %1929 = vmatprep.subr.mxu0 0.0
    %1930 = vmatpush1.msra.mxu0 0.0
    %1931 = vmatprep.subr.mxu0 0.0
    %1932 = vmatpush1.msra.mxu0 0.0
    %1933 = vmatprep.subr.mxu0 0.0
    %1934 = vmatpush1.msra.mxu0 0.0
    %1935 = vmatprep.subr.mxu0 0.0
    %1936 = vmatpush1.msra.mxu0 0.0
    %1937 = vmatprep.subr.mxu0 0.0
    %1938 = vmatpush1.msra.mxu0 0.0
    %1939 = vmatprep.subr.mxu0 0.0
    %1940 = vmatpush1.msra.mxu0 0.0
    %1941 = vmatprep.subr.mxu0 0.0
    %1942 = vmatpush1.msra.mxu0 0.0
    %1943 = vmatprep.subr.mxu0 0.0
    %1944 = vmatpush1.msra.mxu0 0.0
    %1945 = vmatprep.subr.mxu0 0.0
    %1946 = vmatpush1.msra.mxu0 0.0
    %1947 = vmatprep.subr.mxu0 0.0
    %1948 = vmatpush1.msra.mxu0 0.0
    %1949 = vmatprep.subr.mxu0 0.0
    %1950 = vmatpush1.msra.mxu0 0.0
    %1951 = vmatprep.subr.mxu0 0.0
    %1952 = vmatpush1.msra.mxu0 0.0
    %1953 = vmatprep.subr.mxu0 0.0
    %1954 = vmatpush1.msra.mxu0 0.0
    %1955 = vmatprep.subr.mxu0 0.0
    %1956 = vmatpush1.msra.mxu0 0.0
    %1957 = vmatprep.subr.mxu0 0.0
    %1958 = vmatpush1.msra.mxu0 0.0
    %1959 = vmatprep.subr.mxu0 0.0
    %1960 = vmatpush1.msra.mxu0 0.0
    %1961 = vmatprep.subr.mxu0 0.0
    %1962 = vmatpush1.msra.mxu0 0.0
    %1963 = vmatprep.subr.mxu0 0.0
    %1964 = vmatpush1.msra.mxu0 0.0
    %1965 = vmatprep.subr.mxu0 0.0
    %1966 = vmatpush1.msra.mxu0 0.0
    %1967 = vmatprep.subr.mxu0 0.0
    %1968 = vmatpush1.msra.mxu0 0.0
    %1969 = vmatprep.subr.mxu0 0.0
    %1970 = vmatpush1.msra.mxu0 0.0
    %1971 = vmatprep.subr.mxu0 0.0
    %1972 = vmatpush1.msra.mxu0 0.0
    %1973 = vmatprep.subr.mxu0 0.0
    %1974 = vmatpush1.msra.mxu0 0.0
    %1975 = vmatprep.mubr.f32.mxu0 0.0
    %1976 = vmatmul.mubr.f32.gmra.mrb[0].mxu0 %v1907
    %v1977 = vpop.f32.mrb[0].mxu0
    %v1978 = vadd.f32 %v1900, %v1977
    %v1979 = vpop.f32.mrb[0].mxu0
    %1980 = vmatprep.mubr.f32.mxu0 0.0
    %1981 = vmatmul.mubr.f32.gmra.mrb[0].mxu0 %v1909
    %v1982 = vpop.f32.mrb[0].mxu0
    %v1983 = vadd.f32 %v1900, %v1982
    %v1984 = vpop.f32.mrb[0].mxu0
    %1985 = vdwg.mxu0
    %1986 = vst.msk [vmem:[%s2] sm:$0xff] %vm56, %v1978
    %1987 = vst.msk [vmem:[%s2 + $0x8] sm:$0xff] %vm56, %v1983
    // Predicated region
    $region14: #{tpu_custom_call.1} parent=1 // pred_check
      _
    $region15: #{tpu_custom_call.1} parent=1 // pred_check_branch
      %1989 = sbr.rel (0) target = $region17
    $region16: #{tpu_custom_call.1} parent=1 // pred_region
      _
    $region17: #{tpu_custom_call.1} parent=1 // pred_fallthru
      _
    // Predicated region
    $region18: #{tpu_custom_call.1} parent=1 // pred_check
      _
    $region19: #{tpu_custom_call.1} parent=1 // pred_check_branch
      %1991 = sbr.rel (0) target = $region21
    $region20: #{tpu_custom_call.1} parent=1 // pred_region
      _
    $region21: #{tpu_custom_call.1} parent=1 // pred_fallthru
      _
    %1992 = vsyncpa [#allocation3], 1

</llo_original>
